<compile_context>
chip_gen: v6e
topology: v6e:2x2x1
jax: 0.10.0
libtpu: 0.0.40
codegen_flags: <defaults>
</compile_context>

<pallas_src>
import jax
import jax.numpy as jnp
from jax import lax
from jax.experimental import pallas as pl
from jax.experimental.pallas import tpu as pltpu


# --------------------------------- Pallas kernel ---------------------------------

def se_bottleneck_kernel(x_ref,
                         w1_ref, b1_ref,
                         w2_ref, b2_ref,
                         w3_ref, b3_ref,
                         wfc1_ref, wfc2_ref,
                         out_ref,
                         pad_ref):
    Bt, H, W, Cp = x_ref.shape          # Cp = padded input channels (== padded Cout)
    Wp = w1_ref.shape[1]                # Wp = padded conv width
    Op = w3_ref.shape[1]                # Op = padded output channels
    rows = Bt * H * W
    pix = H * W

    # Residual stays f32; a single bf16 cast feeds the conv1 MXU operand.
    x_f32 = x_ref[...]
    x_bf = x_f32.reshape(rows, Cp).astype(jnp.bfloat16)

    # ---- conv1 (1x1) with bn1/bn2 folded into weight + bias, then ReLU ----
    t = jnp.dot(x_bf, w1_ref[...], preferred_element_type=jnp.float32)
    t = jnp.maximum(t + b1_ref[...], 0.0)                         # (rows, Wp) f32

    # ---- conv2 (3x3, stride 1, pad 1) with bn3 folded, then ReLU ----
    # K = 3*Wp im2col over the kx taps, built ONCE and stored in a VMEM scratch with a
    # one-row zero border along H.  The 3 ky taps are then outer-dim slices of the
    # scratch (pure address offsets), accumulated with 3 dots into one f32 accumulator.
    t4 = t.reshape(Bt, H, W, Wp).astype(jnp.bfloat16)
    zc = jnp.zeros((Bt, H, 1, Wp), jnp.bfloat16)
    left = jnp.concatenate([zc, t4[:, :, :W - 1, :]], axis=2)     # in[w-1]
    right = jnp.concatenate([t4[:, :, 1:, :], zc], axis=2)        # in[w+1]
    cols = jnp.concatenate([left, t4, right], axis=-1)            # (Bt, H, W, 3*Wp)

    zrow = jnp.zeros((Bt, 1, W, 3 * Wp), jnp.bfloat16)
    pad_ref[:, 0:1, :, :] = zrow                                  # zero border row (top)
    pad_ref[:, H + 1:H + 2, :, :] = zrow                          # zero border row (bottom)
    pad_ref[:, 1:H + 1, :, :] = cols                              # interior rows

    acc = jnp.zeros((rows, Wp), jnp.float32)
    for ky in range(3):                                           # 3 taps, statically unrolled
        kslab = pad_ref[:, ky:ky + H, :, :].reshape(rows, 3 * Wp)
        acc = acc + jnp.dot(kslab, w2_ref[ky],
                            preferred_element_type=jnp.float32)
    t = jnp.maximum(acc + b2_ref[...], 0.0)                       # (rows, Wp) f32

    # ---- conv3 (1x1) with bn4 folded ----
    t = jnp.dot(t.astype(jnp.bfloat16), w3_ref[...],
                preferred_element_type=jnp.float32)
    t = t + b3_ref[...]                                           # (rows, Op) f32

    # ---- SE: global avg pool -> fc1 -> relu -> fc2 -> sigmoid -> scale ----
    t3 = t.reshape(Bt, pix, Op)
    y = jnp.mean(t3, axis=1)                                      # (Bt, Op)
    h = jnp.maximum(jnp.dot(y.astype(jnp.bfloat16), wfc1_ref[...],
                            preferred_element_type=jnp.float32), 0.0)
    g = jax.nn.sigmoid(jnp.dot(h.astype(jnp.bfloat16), wfc2_ref[...],
                               preferred_element_type=jnp.float32))   # (Bt, Op)

    # ---- SE scale + identity residual (f32) ----
    out = t3 * g[:, None, :] + x_f32.reshape(Bt, pix, Cp)
    out_ref[...] = out.reshape(Bt, H, W, Op).astype(out_ref.dtype)


# --------------------------------- wrapper ---------------------------------

def _full_spec(a):
    n = a.ndim
    return pl.BlockSpec(a.shape, lambda b, _n=n: (0,) * _n)


def se_bottleneck_pallas(x_nchw, kp, *, batch_tile=None,
                         vmem_limit_bytes=48 * 1024 * 1024):
    """x_nchw: (B, Cin, H, W) float32; kp: dict of folded, padded, kernel-layout params."""
    cout = kp["cout"]
    x = jnp.transpose(x_nchw, (0, 2, 3, 1))                       # NCHW -> NHWC
    B, H, W, Cin = x.shape
    Cp, Wp = kp["w1"].shape
    Op = kp["w3"].shape[1]
    assert Cin == cout and Cp == Op, (
        "identity residual requires Cin == Cout (stride=1, downsample=None)")

    # lane-pad channels to a multiple of 128 (padded lanes are exact zeros)
    x = jnp.pad(x, ((0, 0), (0, 0), (0, 0), (0, Cp - Cin)))

    if batch_tile is None:
        # >= 2 grid steps so both v7x TensorCores get work; on v5e/v6e (1 TC) the grid is
        # a sequential loop and the extra step only adds ~0.35us.  Pass batch_tile=B to
        # fuse the whole batch when targeting a single core with ample VMEM.
        batch_tile = B // 2 if (B >= 2 and B % 2 == 0) else B
    assert B % batch_tile == 0
    grid = (B // batch_tile,)

    plist = [kp["w1"], kp["b1"], kp["w2"], kp["b2"], kp["w3"], kp["b3"],
             kp["wfc1"], kp["wfc2"]]

    in_specs = [pl.BlockSpec((batch_tile, H, W, Cp), lambda b: (b, 0, 0, 0))]
    in_specs += [_full_spec(p) for p in plist]

    out = pl.pallas_call(
        se_bottleneck_kernel,
        out_shape=jax.ShapeDtypeStruct((B, H, W, Op), jnp.float32),
        grid=grid,
        in_specs=in_specs,
        out_specs=pl.BlockSpec((batch_tile, H, W, Op), lambda b: (b, 0, 0, 0)),
        scratch_shapes=[pltpu.VMEM((batch_tile, H + 2, W, 3 * Wp), jnp.bfloat16)],
        compiler_params=pltpu.CompilerParams(
            dimension_semantics=("parallel",),
            vmem_limit_bytes=vmem_limit_bytes),
        # NOTE: at realistic SE-ResNet stage shapes (H=W=56, Cp=256, ...) re-derive
        # batch_tile / add an H-tiling grid axis per generation (v7x has only 64 MiB VMEM).
    )(x, *plist)

    out = out[..., :cout]
    return jnp.transpose(out, (0, 3, 1, 2))                       # NHWC -> NCHW


# -------------- pure-JAX reference (PyTorch NCHW semantics, eval-mode BN) --------------

def se_bottleneck_ref(x, p):
    def bn(t, s, b):
        return t * s[None, :, None, None] + b[None, :, None, None]

    def conv(t, w, pad):
        return lax.conv_general_dilated(
            t, w, window_strides=(1, 1), padding=pad,
            dimension_numbers=("NCHW", "OIHW", "NCHW"))

    out = bn(x, p["bn1_s"], p["bn1_b"])
    out = conv(out, p["conv1_w"], "VALID")
    out = jax.nn.relu(bn(out, p["bn2_s"], p["bn2_b"]))
    out = conv(out, p["conv2_w"], ((1, 1), (1, 1)))
    out = jax.nn.relu(bn(out, p["bn3_s"], p["bn3_b"]))
    out = conv(out, p["conv3_w"], "VALID")
    out = bn(out, p["bn4_s"], p["bn4_b"])
    y = out.mean(axis=(2, 3))                                     # (B, Cout)
    y = jax.nn.relu(y @ p["fc1_w"].T)
    y = jax.nn.sigmoid(y @ p["fc2_w"].T)
    out = out * y[:, :, None, None]
    return out + x


# -------------------------- deterministic parameter construction --------------------------

def _round_up(n, m=128):
    return ((n + m - 1) // m) * m


def make_params(key, inplanes, planes, reduction=16, base_width=64, groups=1):
    expansion = 4
    width = int(planes * (base_width / 64.0)) * groups
    cout = planes * expansion
    hidden = int(cout // reduction)
    eps = 1e-5

    keys = jax.random.split(key, 24)   # 4 BN layers x 4 keys + 5 weight tensors = 21 used
    ki = iter(keys)

    def bn_affine(c):
        gamma = jax.random.uniform(next(ki), (c,), jnp.float32, 0.5, 1.5)
        beta = 0.1 * jax.random.normal(next(ki), (c,), jnp.float32)
        rmean = 0.1 * jax.random.normal(next(ki), (c,), jnp.float32)
        rvar = jax.random.uniform(next(ki), (c,), jnp.float32, 0.5, 1.5)
        scale = gamma / jnp.sqrt(rvar + eps)
        shift = beta - rmean * scale
        return scale, shift

    p = {}
    p["bn1_s"], p["bn1_b"] = bn_affine(inplanes)
    p["conv1_w"] = 0.1 * jax.random.normal(next(ki), (width, inplanes, 1, 1), jnp.float32)
    p["bn2_s"], p["bn2_b"] = bn_affine(width)
    p["conv2_w"] = 0.1 * jax.random.normal(next(ki), (width, width, 3, 3), jnp.float32)
    p["bn3_s"], p["bn3_b"] = bn_affine(width)
    p["conv3_w"] = 0.1 * jax.random.normal(next(ki), (cout, width, 1, 1), jnp.float32)
    p["bn4_s"], p["bn4_b"] = bn_affine(cout)
    p["fc1_w"] = 0.1 * jax.random.normal(next(ki), (hidden, cout), jnp.float32)
    p["fc2_w"] = 0.1 * jax.random.normal(next(ki), (cout, hidden), jnp.float32)

    # ---- fold BN affines into conv weights + per-conv f32 bias vectors ----
    # conv1: relu(((x*s1+b1) @ W1^T)*s2 + b2) == relu(x @ W1eff + b1eff)
    w1_t = jnp.transpose(p["conv1_w"][:, :, 0, 0], (1, 0))            # (Cin, width)
    w1_eff = p["bn1_s"][:, None] * w1_t * p["bn2_s"][None, :]
    b1_eff = (p["bn1_b"] @ w1_t) * p["bn2_s"] + p["bn2_b"]
    # conv2 (3x3) followed by bn3
    w2_t = jnp.transpose(p["conv2_w"], (2, 3, 1, 0))                   # (ky, kx, in, out)
    w2_eff = w2_t * p["bn3_s"][None, None, None, :]
    b2_eff = p["bn3_b"]
    # conv3 followed by bn4
    w3_t = jnp.transpose(p["conv3_w"][:, :, 0, 0], (1, 0))             # (width, cout)
    w3_eff = w3_t * p["bn4_s"][None, :]
    b3_eff = p["bn4_b"]

    # ---- pad channel dims to multiples of 128 (lane-dense, exact-zero padding) ----
    Cp, Wp, Op, Hp = (_round_up(inplanes), _round_up(width),
                      _round_up(cout), _round_up(hidden))

    def padw(w, r, c):
        return jnp.pad(w, ((0, r - w.shape[0]), (0, c - w.shape[1]))).astype(jnp.bfloat16)

    def padb(v, n):
        return jnp.pad(v, (0, n - v.shape[0]))[None, :].astype(jnp.float32)

    # w2 kernel layout: (ky, 3*Wp, Wp) where row index = kx*Wp + in_channel — matches the
    # lane order of the in-kernel kx-concatenated im2col slab.
    w2_p = jnp.pad(w2_eff, ((0, 0), (0, 0), (0, Wp - width), (0, Wp - width)))

    kp = {
        "w1": padw(w1_eff, Cp, Wp),                                    # (Cp, Wp)  bf16
        "b1": padb(b1_eff, Wp),                                        # (1, Wp)   f32
        "w2": w2_p.reshape(3, 3 * Wp, Wp).astype(jnp.bfloat16),        # (3,3*Wp,Wp) bf16
        "b2": padb(b2_eff, Wp),                                        # (1, Wp)   f32
        "w3": padw(w3_eff, Wp, Op),                                    # (Wp, Op)  bf16
        "b3": padb(b3_eff, Op),                                        # (1, Op)   f32
        "wfc1": padw(jnp.transpose(p["fc1_w"], (1, 0)), Op, Hp),       # (Op, Hp)  bf16
        "wfc2": padw(jnp.transpose(p["fc2_w"], (1, 0)), Hp, Op),       # (Hp, Op)  bf16
        "cout": cout,
    }
    return p, kp


if __name__ == "__main__":
    # SEBottleneck(inplanes=32, planes=8, stride=1, downsample=None, reduction=16)
    B, planes, H, W = 2, 8, 8, 8
    inplanes = planes * 4          # identity residual requires inplanes == planes * expansion

    key = jax.random.PRNGKey(0)
    kx, kparam = jax.random.split(key)
    x = jax.random.normal(kx, (B, inplanes, H, W), jnp.float32)

    p, kp = make_params(kparam, inplanes, planes, reduction=16)

    out = jax.block_until_ready(se_bottleneck_pallas(x, kp))
    ref = jax.block_until_ready(se_bottleneck_ref(x, p))

    assert out.shape == (B, inplanes, H, W), out.shape
    max_err = float(jnp.max(jnp.abs(out - ref)))
    assert jnp.allclose(out, ref, atol=3e-2, rtol=3e-2), max_err

    print("KERNEL_OK")
</pallas_src>

<mosaic_0001>
module attributes {stable_mosaic.version = 11 : i64} {
  func.func @se_bottleneck_kernel(%arg0: i32, %arg1: memref<1x8x8x128xf32, #tpu.memory_space<vmem>>, %arg2: memref<128x128xbf16, #tpu.memory_space<vmem>>, %arg3: memref<1x128xf32, #tpu.memory_space<vmem>>, %arg4: memref<3x384x128xbf16, #tpu.memory_space<vmem>>, %arg5: memref<1x128xf32, #tpu.memory_space<vmem>>, %arg6: memref<128x128xbf16, #tpu.memory_space<vmem>>, %arg7: memref<1x128xf32, #tpu.memory_space<vmem>>, %arg8: memref<128x128xbf16, #tpu.memory_space<vmem>>, %arg9: memref<128x128xbf16, #tpu.memory_space<vmem>>, %arg10: memref<1x8x8x128xf32, #tpu.memory_space<vmem>>, %arg11: memref<1x10x8x384xbf16, #tpu.memory_space<vmem>>) attributes {dimension_semantics = [#tpu.dimension_semantics<parallel>], iteration_bounds = array<i64: 2>, scalar_prefetch = 0 : i64, scratch_operands = 1 : i64, tpu.core_type = #tpu.core_type<tc>, window_params = [{transform_indices = @transform_0, window_bounds = array<i64: 1, 8, 8, 128>}, {pipeline_mode = #tpu.pipeline_mode<synchronous>, transform_indices = @transform_1, window_bounds = array<i64: 128, 128>}, {pipeline_mode = #tpu.pipeline_mode<synchronous>, transform_indices = @transform_2, window_bounds = array<i64: 1, 128>}, {pipeline_mode = #tpu.pipeline_mode<synchronous>, transform_indices = @transform_3, window_bounds = array<i64: 3, 384, 128>}, {pipeline_mode = #tpu.pipeline_mode<synchronous>, transform_indices = @transform_4, window_bounds = array<i64: 1, 128>}, {pipeline_mode = #tpu.pipeline_mode<synchronous>, transform_indices = @transform_5, window_bounds = array<i64: 128, 128>}, {pipeline_mode = #tpu.pipeline_mode<synchronous>, transform_indices = @transform_6, window_bounds = array<i64: 1, 128>}, {pipeline_mode = #tpu.pipeline_mode<synchronous>, transform_indices = @transform_7, window_bounds = array<i64: 128, 128>}, {pipeline_mode = #tpu.pipeline_mode<synchronous>, transform_indices = @transform_8, window_bounds = array<i64: 128, 128>}, {transform_indices = @transform_9, window_bounds = array<i64: 1, 8, 8, 128>}]} {
    %c0 = arith.constant 0 : index
    %c0_0 = arith.constant 0 : index
    %c0_1 = arith.constant 0 : index
    %c0_2 = arith.constant 0 : index
    %0 = vector.load %arg1[%c0, %c0_0, %c0_1, %c0_2] : memref<1x8x8x128xf32, #tpu.memory_space<vmem>>, vector<1x8x8x128xf32>
    %1 = vector.shape_cast %0 : vector<1x8x8x128xf32> to vector<64x128xf32>
    %2 = arith.truncf %1 : vector<64x128xf32> to vector<64x128xbf16>
    %c0_3 = arith.constant 0 : index
    %c0_4 = arith.constant 0 : index
    %3 = vector.load %arg2[%c0_3, %c0_4] : memref<128x128xbf16, #tpu.memory_space<vmem>>, vector<128x128xbf16>
    %cst = arith.constant dense<0.000000e+00> : vector<64x128xf32>
    %4 = tpu.matmul %2, %3, %cst {dimension_numbers = #tpu.dot_dimension_numbers<[1], [0], [0], [1], [0, 0, 1, 1], [], []>} : vector<64x128xbf16>, vector<128x128xbf16>, vector<64x128xf32> -> vector<64x128xf32>
    %c0_5 = arith.constant 0 : index
    %c0_6 = arith.constant 0 : index
    %5 = vector.load %arg3[%c0_5, %c0_6] : memref<1x128xf32, #tpu.memory_space<vmem>>, vector<1x128xf32>
    %6 = vector.broadcast %5 : vector<1x128xf32> to vector<64x128xf32>
    %7 = arith.addf %4, %6 : vector<64x128xf32>
    %cst_7 = arith.constant 0.000000e+00 : f32
    %8 = vector.broadcast %cst_7 : f32 to vector<64x128xf32>
    %9 = arith.maximumf %7, %8 : vector<64x128xf32>
    %10 = vector.shape_cast %9 : vector<64x128xf32> to vector<1x8x8x128xf32>
    %11 = arith.truncf %10 : vector<1x8x8x128xf32> to vector<1x8x8x128xbf16>
    %cst_8 = arith.constant 0.000000e+00 : bf16
    %12 = vector.broadcast %cst_8 : bf16 to vector<1x8x1x128xbf16>
    %13 = vector.extract_strided_slice %11 {offsets = [0, 0, 0, 0], sizes = [1, 8, 7, 128], strides = [1, 1, 1, 1]} : vector<1x8x8x128xbf16> to vector<1x8x7x128xbf16>
    %14 = tpu.concatenate %12, %13 in 2 : vector<1x8x1x128xbf16>, vector<1x8x7x128xbf16> -> vector<1x8x8x128xbf16>
    %15 = vector.extract_strided_slice %11 {offsets = [0, 0, 1, 0], sizes = [1, 8, 7, 128], strides = [1, 1, 1, 1]} : vector<1x8x8x128xbf16> to vector<1x8x7x128xbf16>
    %16 = tpu.concatenate %15, %12 in 2 : vector<1x8x7x128xbf16>, vector<1x8x1x128xbf16> -> vector<1x8x8x128xbf16>
    %17 = tpu.concatenate %14, %11, %16 in 3 : vector<1x8x8x128xbf16>, vector<1x8x8x128xbf16>, vector<1x8x8x128xbf16> -> vector<1x8x8x384xbf16>
    %cst_9 = arith.constant 0.000000e+00 : bf16
    %18 = vector.broadcast %cst_9 : bf16 to vector<1x1x8x384xbf16>
    %c0_10 = arith.constant 0 : index
    %c0_11 = arith.constant 0 : index
    %c0_12 = arith.constant 0 : index
    %c0_13 = arith.constant 0 : index
    %19 = vector.load %arg11[%c0_10, %c0_11, %c0_12, %c0_13] : memref<1x10x8x384xbf16, #tpu.memory_space<vmem>>, vector<1x1x8x384xbf16>
    tpu.vector_store %arg11[%c0_10, %c0_11, %c0_12, %c0_13], %18 {strides = array<i32>} : memref<1x10x8x384xbf16, #tpu.memory_space<vmem>>, vector<1x1x8x384xbf16>,
    %c0_14 = arith.constant 0 : index
    %c9 = arith.constant 9 : index
    %c0_15 = arith.constant 0 : index
    %c0_16 = arith.constant 0 : index
    %20 = vector.load %arg11[%c0_14, %c9, %c0_15, %c0_16] : memref<1x10x8x384xbf16, #tpu.memory_space<vmem>>, vector<1x1x8x384xbf16>
    tpu.vector_store %arg11[%c0_14, %c9, %c0_15, %c0_16], %18 {strides = array<i32>} : memref<1x10x8x384xbf16, #tpu.memory_space<vmem>>, vector<1x1x8x384xbf16>,
    %c0_17 = arith.constant 0 : index
    %c1 = arith.constant 1 : index
    %c0_18 = arith.constant 0 : index
    %c0_19 = arith.constant 0 : index
    %21 = vector.load %arg11[%c0_17, %c1, %c0_18, %c0_19] : memref<1x10x8x384xbf16, #tpu.memory_space<vmem>>, vector<1x8x8x384xbf16>
    tpu.vector_store %arg11[%c0_17, %c1, %c0_18, %c0_19], %17 {strides = array<i32>} : memref<1x10x8x384xbf16, #tpu.memory_space<vmem>>, vector<1x8x8x384xbf16>,
    %cst_20 = arith.constant 0.000000e+00 : f32
    %22 = vector.broadcast %cst_20 : f32 to vector<64x128xf32>
    %c0_21 = arith.constant 0 : index
    %c0_22 = arith.constant 0 : index
    %c0_23 = arith.constant 0 : index
    %c0_24 = arith.constant 0 : index
    %23 = vector.load %arg11[%c0_21, %c0_22, %c0_23, %c0_24] : memref<1x10x8x384xbf16, #tpu.memory_space<vmem>>, vector<1x8x8x384xbf16>
    %24 = vector.shape_cast %23 : vector<1x8x8x384xbf16> to vector<64x384xbf16>
    %c0_25 = arith.constant 0 : index
    %c0_26 = arith.constant 0 : index
    %c0_27 = arith.constant 0 : index
    %25 = vector.load %arg4[%c0_25, %c0_26, %c0_27] : memref<3x384x128xbf16, #tpu.memory_space<vmem>>, vector<1x384x128xbf16>
    %26 = vector.shape_cast %25 : vector<1x384x128xbf16> to vector<384x128xbf16>
    %cst_28 = arith.constant dense<0.000000e+00> : vector<64x128xf32>
    %27 = tpu.matmul %24, %26, %cst_28 {dimension_numbers = #tpu.dot_dimension_numbers<[1], [0], [0], [1], [0, 0, 1, 1], [], []>} : vector<64x384xbf16>, vector<384x128xbf16>, vector<64x128xf32> -> vector<64x128xf32>
    %28 = arith.addf %22, %27 : vector<64x128xf32>
    %c0_29 = arith.constant 0 : index
    %c1_30 = arith.constant 1 : index
    %c0_31 = arith.constant 0 : index
    %c0_32 = arith.constant 0 : index
    %29 = vector.load %arg11[%c0_29, %c1_30, %c0_31, %c0_32] : memref<1x10x8x384xbf16, #tpu.memory_space<vmem>>, vector<1x8x8x384xbf16>
    %30 = vector.shape_cast %29 : vector<1x8x8x384xbf16> to vector<64x384xbf16>
    %c1_33 = arith.constant 1 : index
    %c0_34 = arith.constant 0 : index
    %c0_35 = arith.constant 0 : index
    %31 = vector.load %arg4[%c1_33, %c0_34, %c0_35] : memref<3x384x128xbf16, #tpu.memory_space<vmem>>, vector<1x384x128xbf16>
    %32 = vector.shape_cast %31 : vector<1x384x128xbf16> to vector<384x128xbf16>
    %cst_36 = arith.constant dense<0.000000e+00> : vector<64x128xf32>
    %33 = tpu.matmul %30, %32, %cst_36 {dimension_numbers = #tpu.dot_dimension_numbers<[1], [0], [0], [1], [0, 0, 1, 1], [], []>} : vector<64x384xbf16>, vector<384x128xbf16>, vector<64x128xf32> -> vector<64x128xf32>
    %34 = arith.addf %28, %33 : vector<64x128xf32>
    %c0_37 = arith.constant 0 : index
    %c2 = arith.constant 2 : index
    %c0_38 = arith.constant 0 : index
    %c0_39 = arith.constant 0 : index
    %35 = vector.load %arg11[%c0_37, %c2, %c0_38, %c0_39] : memref<1x10x8x384xbf16, #tpu.memory_space<vmem>>, vector<1x8x8x384xbf16>
    %36 = vector.shape_cast %35 : vector<1x8x8x384xbf16> to vector<64x384xbf16>
    %c2_40 = arith.constant 2 : index
    %c0_41 = arith.constant 0 : index
    %c0_42 = arith.constant 0 : index
    %37 = vector.load %arg4[%c2_40, %c0_41, %c0_42] : memref<3x384x128xbf16, #tpu.memory_space<vmem>>, vector<1x384x128xbf16>
    %38 = vector.shape_cast %37 : vector<1x384x128xbf16> to vector<384x128xbf16>
    %cst_43 = arith.constant dense<0.000000e+00> : vector<64x128xf32>
    %39 = tpu.matmul %36, %38, %cst_43 {dimension_numbers = #tpu.dot_dimension_numbers<[1], [0], [0], [1], [0, 0, 1, 1], [], []>} : vector<64x384xbf16>, vector<384x128xbf16>, vector<64x128xf32> -> vector<64x128xf32>
    %40 = arith.addf %34, %39 : vector<64x128xf32>
    %c0_44 = arith.constant 0 : index
    %c0_45 = arith.constant 0 : index
    %41 = vector.load %arg5[%c0_44, %c0_45] : memref<1x128xf32, #tpu.memory_space<vmem>>, vector<1x128xf32>
    %42 = vector.broadcast %41 : vector<1x128xf32> to vector<64x128xf32>
    %43 = arith.addf %40, %42 : vector<64x128xf32>
    %cst_46 = arith.constant 0.000000e+00 : f32
    %44 = vector.broadcast %cst_46 : f32 to vector<64x128xf32>
    %45 = arith.maximumf %43, %44 : vector<64x128xf32>
    %46 = arith.truncf %45 : vector<64x128xf32> to vector<64x128xbf16>
    %c0_47 = arith.constant 0 : index
    %c0_48 = arith.constant 0 : index
    %47 = vector.load %arg6[%c0_47, %c0_48] : memref<128x128xbf16, #tpu.memory_space<vmem>>, vector<128x128xbf16>
    %cst_49 = arith.constant dense<0.000000e+00> : vector<64x128xf32>
    %48 = tpu.matmul %46, %47, %cst_49 {dimension_numbers = #tpu.dot_dimension_numbers<[1], [0], [0], [1], [0, 0, 1, 1], [], []>} : vector<64x128xbf16>, vector<128x128xbf16>, vector<64x128xf32> -> vector<64x128xf32>
    %c0_50 = arith.constant 0 : index
    %c0_51 = arith.constant 0 : index
    %49 = vector.load %arg7[%c0_50, %c0_51] : memref<1x128xf32, #tpu.memory_space<vmem>>, vector<1x128xf32>
    %50 = vector.broadcast %49 : vector<1x128xf32> to vector<64x128xf32>
    %51 = arith.addf %48, %50 : vector<64x128xf32>
    %52 = vector.shape_cast %51 : vector<64x128xf32> to vector<1x64x128xf32>
    %cst_52 = arith.constant dense<0.000000e+00> : vector<1x128xf32>
    %53 = vector.multi_reduction <add>, %52, %cst_52 [1] : vector<1x64x128xf32> to vector<1x128xf32>
    %cst_53 = arith.constant 6.400000e+01 : f32
    %54 = vector.broadcast %cst_53 : f32 to vector<1x128xf32>
    %55 = arith.divf %53, %54 : vector<1x128xf32>
    %56 = arith.truncf %55 : vector<1x128xf32> to vector<1x128xbf16>
    %c0_54 = arith.constant 0 : index
    %c0_55 = arith.constant 0 : index
    %57 = vector.load %arg8[%c0_54, %c0_55] : memref<128x128xbf16, #tpu.memory_space<vmem>>, vector<128x128xbf16>
    %cst_56 = arith.constant dense<0.000000e+00> : vector<1x128xf32>
    %58 = tpu.matmul %56, %57, %cst_56 {dimension_numbers = #tpu.dot_dimension_numbers<[1], [0], [0], [1], [0, 0, 1, 1], [], []>} : vector<1x128xbf16>, vector<128x128xbf16>, vector<1x128xf32> -> vector<1x128xf32>
    %cst_57 = arith.constant 0.000000e+00 : f32
    %59 = vector.broadcast %cst_57 : f32 to vector<1x128xf32>
    %60 = arith.maximumf %58, %59 : vector<1x128xf32>
    %61 = arith.truncf %60 : vector<1x128xf32> to vector<1x128xbf16>
    %c0_58 = arith.constant 0 : index
    %c0_59 = arith.constant 0 : index
    %62 = vector.load %arg9[%c0_58, %c0_59] : memref<128x128xbf16, #tpu.memory_space<vmem>>, vector<128x128xbf16>
    %cst_60 = arith.constant dense<0.000000e+00> : vector<1x128xf32>
    %63 = tpu.matmul %61, %62, %cst_60 {dimension_numbers = #tpu.dot_dimension_numbers<[1], [0], [0], [1], [0, 0, 1, 1], [], []>} : vector<1x128xbf16>, vector<128x128xbf16>, vector<1x128xf32> -> vector<1x128xf32>
    %64 = arith.negf %63 : vector<1x128xf32>
    %65 = math.exp %64 : vector<1x128xf32>
    %cst_61 = arith.constant 1.000000e+00 : f32
    %66 = vector.broadcast %cst_61 : f32 to vector<1x128xf32>
    %67 = arith.addf %66, %65 : vector<1x128xf32>
    %68 = arith.divf %66, %67 : vector<1x128xf32>
    %69 = vector.shape_cast %68 : vector<1x128xf32> to vector<1x1x128xf32>
    %70 = vector.broadcast %69 : vector<1x1x128xf32> to vector<1x64x128xf32>
    %71 = arith.mulf %52, %70 : vector<1x64x128xf32>
    %72 = vector.shape_cast %0 : vector<1x8x8x128xf32> to vector<1x64x128xf32>
    %73 = arith.addf %71, %72 : vector<1x64x128xf32>
    %74 = vector.shape_cast %73 : vector<1x64x128xf32> to vector<1x8x8x128xf32>
    %c0_62 = arith.constant 0 : index
    %c0_63 = arith.constant 0 : index
    %c0_64 = arith.constant 0 : index
    %c0_65 = arith.constant 0 : index
    %75 = vector.load %arg10[%c0_62, %c0_63, %c0_64, %c0_65] : memref<1x8x8x128xf32, #tpu.memory_space<vmem>>, vector<1x8x8x128xf32>
    tpu.vector_store %arg10[%c0_62, %c0_63, %c0_64, %c0_65], %74 {strides = array<i32>} : memref<1x8x8x128xf32, #tpu.memory_space<vmem>>, vector<1x8x8x128xf32>,
    return
  }
  func.func @transform_0(%arg0: i32) -> (i32, i32, i32, i32) {
    %c0_i32 = arith.constant 0 : i32
    %c0_i32_0 = arith.constant 0 : i32
    %c0_i32_1 = arith.constant 0 : i32
    %c0_i32_2 = arith.constant 0 : i32
    return %arg0, %c0_i32, %c0_i32_0, %c0_i32_1 : i32, i32, i32, i32
  }
  func.func @transform_1(%arg0: i32) -> (i32, i32) {
    %c0_i32 = arith.constant 0 : i32
    %c0_i32_0 = arith.constant 0 : i32
    %c0_i32_1 = arith.constant 0 : i32
    return %c0_i32, %c0_i32_0 : i32, i32
  }
  func.func @transform_2(%arg0: i32) -> (i32, i32) {
    %c0_i32 = arith.constant 0 : i32
    %c0_i32_0 = arith.constant 0 : i32
    %c0_i32_1 = arith.constant 0 : i32
    return %c0_i32, %c0_i32_0 : i32, i32
  }
  func.func @transform_3(%arg0: i32) -> (i32, i32, i32) {
    %c0_i32 = arith.constant 0 : i32
    %c0_i32_0 = arith.constant 0 : i32
    %c0_i32_1 = arith.constant 0 : i32
    %c0_i32_2 = arith.constant 0 : i32
    return %c0_i32, %c0_i32_0, %c0_i32_1 : i32, i32, i32
  }
  func.func @transform_4(%arg0: i32) -> (i32, i32) {
    %c0_i32 = arith.constant 0 : i32
    %c0_i32_0 = arith.constant 0 : i32
    %c0_i32_1 = arith.constant 0 : i32
    return %c0_i32, %c0_i32_0 : i32, i32
  }
  func.func @transform_5(%arg0: i32) -> (i32, i32) {
    %c0_i32 = arith.constant 0 : i32
    %c0_i32_0 = arith.constant 0 : i32
    %c0_i32_1 = arith.constant 0 : i32
    return %c0_i32, %c0_i32_0 : i32, i32
  }
  func.func @transform_6(%arg0: i32) -> (i32, i32) {
    %c0_i32 = arith.constant 0 : i32
    %c0_i32_0 = arith.constant 0 : i32
    %c0_i32_1 = arith.constant 0 : i32
    return %c0_i32, %c0_i32_0 : i32, i32
  }
  func.func @transform_7(%arg0: i32) -> (i32, i32) {
    %c0_i32 = arith.constant 0 : i32
    %c0_i32_0 = arith.constant 0 : i32
    %c0_i32_1 = arith.constant 0 : i32
    return %c0_i32, %c0_i32_0 : i32, i32
  }
  func.func @transform_8(%arg0: i32) -> (i32, i32) {
    %c0_i32 = arith.constant 0 : i32
    %c0_i32_0 = arith.constant 0 : i32
    %c0_i32_1 = arith.constant 0 : i32
    return %c0_i32, %c0_i32_0 : i32, i32
  }
  func.func @transform_9(%arg0: i32) -> (i32, i32, i32, i32) {
    %c0_i32 = arith.constant 0 : i32
    %c0_i32_0 = arith.constant 0 : i32
    %c0_i32_1 = arith.constant 0 : i32
    %c0_i32_2 = arith.constant 0 : i32
    return %arg0, %c0_i32, %c0_i32_0, %c0_i32_1 : i32, i32, i32, i32
  }
}

</mosaic_0001>

<llo_original>
// kernel: tpu_custom_call.1
$region0: #{tpu_custom_call.1}
  #allocation0 [shape = 'u32[]', space=smem, size = 0x4, offset = 0x4, fixed_abs, tag = 'smem constant byte address 0x4 - core index']
  #allocation1 [shape = 'u32[144,128]{1,0:T(1,128)}', space=vmem, size = 0x12000, scoped, tag = 'internal scratch']
  #allocation2 [shape = 'bf16[1,10,8,384]{3,2,1,0:T(8,128)(2,1)}', space=vmem, size = 0xf000, scoped, tag = 'scratch operand']
  %s0 = inlined_call_operand.hbm [shape: f32[2,8,8,128], index: 0, kind: input, shape index: {}]
  %s1 = inlined_call_operand.hbm [shape: bf16[128,128], index: 1, kind: input, shape index: {}]
  %s2 = inlined_call_operand.vmem [shape: f32[1,128], index: 2, kind: input, shape index: {}]
  %s3 = inlined_call_operand.hbm [shape: bf16[3,384,128], index: 3, kind: input, shape index: {}]
  %s4 = inlined_call_operand.vmem [shape: f32[1,128], index: 4, kind: input, shape index: {}]
  %s5 = inlined_call_operand.hbm [shape: bf16[128,128], index: 5, kind: input, shape index: {}]
  %s6 = inlined_call_operand.vmem [shape: f32[1,128], index: 6, kind: input, shape index: {}]
  %s7 = inlined_call_operand.hbm [shape: bf16[128,128], index: 7, kind: input, shape index: {}]
  %s8 = inlined_call_operand.hbm [shape: bf16[128,128], index: 8, kind: input, shape index: {}]
  %s9 = inlined_call_operand.hbm [shape: f32[2,8,8,128], index: 9, kind: output, shape index: {}]
  %s10 = sld [smem:[#allocation0]]
  $region93: #{tpu_custom_call.1} parent=0
    _
  %s12 = ssub.s32 1, %s10
  %s13 = scalar_select 0, %s12, %s10
  $region1: #{tpu_custom_call.1} parent=0
    #allocation3 [shape = 'u8[65536]{0}', space=vmem, size = 0x10000, scoped, tag = 'input window, operand 0']
    #allocation4 [shape = 's32[2]{0}', space=sflag, size = 0x8, scoped, tag = 'scoped memory for tpu_custom_call.1']
    #allocation5 [shape = 's32[2]{0}', space=sflag, size = 0x8, scoped, tag = 'scoped memory for tpu_custom_call.1']
    #allocation6 [shape = 'u8[32768]{0}', space=vmem, size = 0x8000, scoped, tag = 'input window, operand 1, single buffered']
    #allocation7 [shape = 's32[1]{0}', space=sflag, size = 0x4, scoped, tag = 'scoped memory for tpu_custom_call.1']
    #allocation8 [shape = 'u8[294912]{0}', space=vmem, size = 0x48000, scoped, tag = 'input window, operand 3, single buffered']
    #allocation9 [shape = 'u8[32768]{0}', space=vmem, size = 0x8000, scoped, tag = 'input window, operand 5, single buffered']
    #allocation10 [shape = 's32[1]{0}', space=sflag, size = 0x4, scoped, tag = 'scoped memory for tpu_custom_call.1']
    #allocation11 [shape = 'u8[32768]{0}', space=vmem, size = 0x8000, scoped, tag = 'input window, operand 7, single buffered']
    #allocation12 [shape = 'u8[32768]{0}', space=vmem, size = 0x8000, scoped, tag = 'input window, operand 8, single buffered']
    #allocation13 [shape = 's32[1]{0}', space=sflag, size = 0x4, scoped, tag = 'scoped memory for tpu_custom_call.1']
    #allocation14 [shape = 'u8[65536]{0}', space=vmem, size = 0x10000, scoped, tag = 'output window, operand 0']
    %14 = vsyncpa [#allocation4], 0
    %s15 = scalar_lea.sflag [#allocation4], 1
    %16 = vsyncpa %s15, 0
    %17 = vsyncpa [#allocation7], 0
    %18 = vsyncpa [#allocation10], 0
    %19 = vsyncpa [#allocation13], 0
    %20 = vsyncpa [#allocation5], 0
    %s21 = scalar_lea.sflag [#allocation5], 1
    %22 = vsyncpa %s21, 0
    loop: start=0, step=1, limit=4
    $region2: #{tpu_custom_call.1} parent=1 // loop_pre_header
      _
    $region3: #{tpu_custom_call.1} parent=1 // loop_header
      %s24 = sphi 0, %s28
      %p25 = scmp.ge.s32.totalorder %s24, 4
      %s34 = sphi 0, %s36
      %s37 = sphi 0, %s34
      %s38 = sphi 0, %s37
      %s54 = sphi 0, %s38
      %s58 = sphi 0, %s58
      %s60 = sphi 0, %s58
      %s61 = sphi 0, %s60
      %s75 = sphi 0, %s61
      %s79 = sphi 0, %s79
      %s81 = sphi 0, %s79
      %s82 = sphi 0, %s81
      %s96 = sphi 0, %s82
      %s100 = sphi 0, %s100
      %s102 = sphi 0, %s100
      %s103 = sphi 0, %s102
      %s117 = sphi 0, %s103
      %s121 = sphi 0, %s121
      %s123 = sphi 0, %s121
      %s124 = sphi 0, %s123
      %s138 = sphi 0, %s124
      %s142 = sphi 0, %s142
      %s144 = sphi 0, %s142
      %s145 = sphi 0, %s144
      %s159 = sphi 0, %s145
      %s163 = sphi 0, %s163
      %s165 = sphi 0, %s163
      %s166 = sphi 0, %s165
      %s180 = sphi 0, %s166
      %s184 = sphi 0, %s184
      %s186 = sphi 0, %s184
      %s187 = sphi 0, %s186
      %s201 = sphi 0, %s187
      %s205 = sphi 0, %s205
      %s207 = sphi 0, %s205
      %s208 = sphi 0, %s207
      %s222 = sphi 0, %s208
      %s228 = sphi 0, %s230
      %s231 = sphi 0, %s228
      %s232 = sphi 0, %s231
      %s248 = sphi 0, %s232
    $region4: #{tpu_custom_call.1} parent=1 // loop_header_branch
      %27 = sbr.rel (%p25) target = $region8
    $region5: #{tpu_custom_call.1} parent=1 // loop_body
      %s29 = ssub.s32 %s24, 1
      %s30 = ssub.s32 %s24, 2
      %s31 = sadd.s32 %s24, 1
      %s32 = ssub.s32 %s24, %s31
      %p33 = scmp.eq.s32.totalorder %s32, 0
      %s35 = sadd.s32 %s34, 1
      %s36 = scalar_select %p33, %s34, %s35
      %p39 = pneg %p33
      %p40 = scmp.eq.s32.totalorder %s24, 1
      %p41 = por %p39, %p40
      %p42 = scmp.ne.s32.totalorder %s34, %s37
      %p43 = scmp.eq.s32.totalorder %s24, 0
      %p44 = por %p42, %p43
      %p45 = scmp.ne.s32.totalorder %s34, %s37
      %p46 = scmp.eq.s32.totalorder %s29, 1
      %p47 = por %p45, %p46
      %p48 = scmp.ne.s32.totalorder %s37, %s38
      %p49 = scmp.eq.s32.totalorder %s29, 0
      %p50 = por %p48, %p49
      %p51 = scmp.ne.s32.totalorder %s37, %s38
      %p52 = scmp.eq.s32.totalorder %s30, 1
      %p53 = por %p51, %p52
      %p55 = scmp.ne.s32.totalorder %s38, %s54
      %p56 = scmp.eq.s32.totalorder %s30, 0
      %p57 = por %p55, %p56
      %s59 = sadd.s32 %s58, 1
      %p62 = scmp.eq.s32.totalorder %s24, 1
      %p63 = scmp.ne.s32.totalorder %s58, %s60
      %p64 = scmp.eq.s32.totalorder %s24, 0
      %p65 = por %p63, %p64
      %p66 = scmp.ne.s32.totalorder %s58, %s60
      %p67 = scmp.eq.s32.totalorder %s29, 1
      %p68 = por %p66, %p67
      %p69 = scmp.ne.s32.totalorder %s60, %s61
      %p70 = scmp.eq.s32.totalorder %s29, 0
      %p71 = por %p69, %p70
      %p72 = scmp.ne.s32.totalorder %s60, %s61
      %p73 = scmp.eq.s32.totalorder %s30, 1
      %p74 = por %p72, %p73
      %p76 = scmp.ne.s32.totalorder %s61, %s75
      %p77 = scmp.eq.s32.totalorder %s30, 0
      %p78 = por %p76, %p77
      %s80 = sadd.s32 %s79, 1
      %p83 = scmp.eq.s32.totalorder %s24, 1
      %p84 = scmp.ne.s32.totalorder %s79, %s81
      %p85 = scmp.eq.s32.totalorder %s24, 0
      %p86 = por %p84, %p85
      %p87 = scmp.ne.s32.totalorder %s79, %s81
      %p88 = scmp.eq.s32.totalorder %s29, 1
      %p89 = por %p87, %p88
      %p90 = scmp.ne.s32.totalorder %s81, %s82
      %p91 = scmp.eq.s32.totalorder %s29, 0
      %p92 = por %p90, %p91
      %p93 = scmp.ne.s32.totalorder %s81, %s82
      %p94 = scmp.eq.s32.totalorder %s30, 1
      %p95 = por %p93, %p94
      %p97 = scmp.ne.s32.totalorder %s82, %s96
      %p98 = scmp.eq.s32.totalorder %s30, 0
      %p99 = por %p97, %p98
      %s101 = sadd.s32 %s100, 1
      %p104 = scmp.eq.s32.totalorder %s24, 1
      %p105 = scmp.ne.s32.totalorder %s100, %s102
      %p106 = scmp.eq.s32.totalorder %s24, 0
      %p107 = por %p105, %p106
      %p108 = scmp.ne.s32.totalorder %s100, %s102
      %p109 = scmp.eq.s32.totalorder %s29, 1
      %p110 = por %p108, %p109
      %p111 = scmp.ne.s32.totalorder %s102, %s103
      %p112 = scmp.eq.s32.totalorder %s29, 0
      %p113 = por %p111, %p112
      %p114 = scmp.ne.s32.totalorder %s102, %s103
      %p115 = scmp.eq.s32.totalorder %s30, 1
      %p116 = por %p114, %p115
      %p118 = scmp.ne.s32.totalorder %s103, %s117
      %p119 = scmp.eq.s32.totalorder %s30, 0
      %p120 = por %p118, %p119
      %s122 = sadd.s32 %s121, 1
      %p125 = scmp.eq.s32.totalorder %s24, 1
      %p126 = scmp.ne.s32.totalorder %s121, %s123
      %p127 = scmp.eq.s32.totalorder %s24, 0
      %p128 = por %p126, %p127
      %p129 = scmp.ne.s32.totalorder %s121, %s123
      %p130 = scmp.eq.s32.totalorder %s29, 1
      %p131 = por %p129, %p130
      %p132 = scmp.ne.s32.totalorder %s123, %s124
      %p133 = scmp.eq.s32.totalorder %s29, 0
      %p134 = por %p132, %p133
      %p135 = scmp.ne.s32.totalorder %s123, %s124
      %p136 = scmp.eq.s32.totalorder %s30, 1
      %p137 = por %p135, %p136
      %p139 = scmp.ne.s32.totalorder %s124, %s138
      %p140 = scmp.eq.s32.totalorder %s30, 0
      %p141 = por %p139, %p140
      %s143 = sadd.s32 %s142, 1
      %p146 = scmp.eq.s32.totalorder %s24, 1
      %p147 = scmp.ne.s32.totalorder %s142, %s144
      %p148 = scmp.eq.s32.totalorder %s24, 0
      %p149 = por %p147, %p148
      %p150 = scmp.ne.s32.totalorder %s142, %s144
      %p151 = scmp.eq.s32.totalorder %s29, 1
      %p152 = por %p150, %p151
      %p153 = scmp.ne.s32.totalorder %s144, %s145
      %p154 = scmp.eq.s32.totalorder %s29, 0
      %p155 = por %p153, %p154
      %p156 = scmp.ne.s32.totalorder %s144, %s145
      %p157 = scmp.eq.s32.totalorder %s30, 1
      %p158 = por %p156, %p157
      %p160 = scmp.ne.s32.totalorder %s145, %s159
      %p161 = scmp.eq.s32.totalorder %s30, 0
      %p162 = por %p160, %p161
      %s164 = sadd.s32 %s163, 1
      %p167 = scmp.eq.s32.totalorder %s24, 1
      %p168 = scmp.ne.s32.totalorder %s163, %s165
      %p169 = scmp.eq.s32.totalorder %s24, 0
      %p170 = por %p168, %p169
      %p171 = scmp.ne.s32.totalorder %s163, %s165
      %p172 = scmp.eq.s32.totalorder %s29, 1
      %p173 = por %p171, %p172
      %p174 = scmp.ne.s32.totalorder %s165, %s166
      %p175 = scmp.eq.s32.totalorder %s29, 0
      %p176 = por %p174, %p175
      %p177 = scmp.ne.s32.totalorder %s165, %s166
      %p178 = scmp.eq.s32.totalorder %s30, 1
      %p179 = por %p177, %p178
      %p181 = scmp.ne.s32.totalorder %s166, %s180
      %p182 = scmp.eq.s32.totalorder %s30, 0
      %p183 = por %p181, %p182
      %s185 = sadd.s32 %s184, 1
      %p188 = scmp.eq.s32.totalorder %s24, 1
      %p189 = scmp.ne.s32.totalorder %s184, %s186
      %p190 = scmp.eq.s32.totalorder %s24, 0
      %p191 = por %p189, %p190
      %p192 = scmp.ne.s32.totalorder %s184, %s186
      %p193 = scmp.eq.s32.totalorder %s29, 1
      %p194 = por %p192, %p193
      %p195 = scmp.ne.s32.totalorder %s186, %s187
      %p196 = scmp.eq.s32.totalorder %s29, 0
      %p197 = por %p195, %p196
      %p198 = scmp.ne.s32.totalorder %s186, %s187
      %p199 = scmp.eq.s32.totalorder %s30, 1
      %p200 = por %p198, %p199
      %p202 = scmp.ne.s32.totalorder %s187, %s201
      %p203 = scmp.eq.s32.totalorder %s30, 0
      %p204 = por %p202, %p203
      %s206 = sadd.s32 %s205, 1
      %p209 = scmp.eq.s32.totalorder %s24, 1
      %p210 = scmp.ne.s32.totalorder %s205, %s207
      %p211 = scmp.eq.s32.totalorder %s24, 0
      %p212 = por %p210, %p211
      %p213 = scmp.ne.s32.totalorder %s205, %s207
      %p214 = scmp.eq.s32.totalorder %s29, 1
      %p215 = por %p213, %p214
      %p216 = scmp.ne.s32.totalorder %s207, %s208
      %p217 = scmp.eq.s32.totalorder %s29, 0
      %p218 = por %p216, %p217
      %p219 = scmp.ne.s32.totalorder %s207, %s208
      %p220 = scmp.eq.s32.totalorder %s30, 1
      %p221 = por %p219, %p220
      %p223 = scmp.ne.s32.totalorder %s208, %s222
      %p224 = scmp.eq.s32.totalorder %s30, 0
      %p225 = por %p223, %p224
      %s226 = ssub.s32 %s24, %s31
      %p227 = scmp.eq.s32.totalorder %s226, 0
      %s229 = sadd.s32 %s228, 1
      %s230 = scalar_select %p227, %s228, %s229
      %p233 = pneg %p227
      %p234 = scmp.eq.s32.totalorder %s24, 1
      %p235 = por %p233, %p234
      %p236 = scmp.ne.s32.totalorder %s228, %s231
      %p237 = scmp.eq.s32.totalorder %s24, 0
      %p238 = por %p236, %p237
      %p239 = scmp.ne.s32.totalorder %s228, %s231
      %p240 = scmp.eq.s32.totalorder %s29, 1
      %p241 = por %p239, %p240
      %p242 = scmp.ne.s32.totalorder %s231, %s232
      %p243 = scmp.eq.s32.totalorder %s29, 0
      %p244 = por %p242, %p243
      %p245 = scmp.ne.s32.totalorder %s231, %s232
      %p246 = scmp.eq.s32.totalorder %s30, 1
      %p247 = por %p245, %p246
      %p249 = scmp.ne.s32.totalorder %s232, %s248
      %p250 = scmp.eq.s32.totalorder %s30, 0
      %p251 = por %p249, %p250
      %p252 = scmp.le.s32.totalorder 1, %s24
      %p253 = scmp.lt.s32.totalorder %s24, 3
      %p254 = pnand %p252, %p253
      %p255 = pneg %p254
      // Predicated region
      $region9: #{tpu_custom_call.1} parent=5 // pred_check
        _
      $region10: #{tpu_custom_call.1} parent=5 // pred_check_branch
        %257 = sbr.rel (%p254) target = $region12
      $region11: #{tpu_custom_call.1} parent=5 // pred_region
        %s258 = ssub.s32 %s24, 1
        // Predicated region
        $region13: #{tpu_custom_call.1} parent=11 // pred_check
          %p259 = pneg %p71
        $region14: #{tpu_custom_call.1} parent=11 // pred_check_branch
          %261 = sbr.rel (%p259) target = $region16
        $region15: #{tpu_custom_call.1} parent=11 // pred_region
          %s263 = ssub.s32 1024, 1024
          %264 = vsyncadd [#allocation7], %s263
          %s265 = sshll.u32 [#allocation6], 4
          %s266 = int_to_ptr.vmem [resolvable:$true] %s265
          %271 = dma.hbm_to_vmem [thread:$0]  %s1, 1024, %s266, [#allocation7], 64, 64, 4
        $region16: #{tpu_custom_call.1} parent=11 // pred_fallthru
          _
        // Predicated region
        $region17: #{tpu_custom_call.1} parent=11 // pred_check
          %p272 = pneg %p92
        $region18: #{tpu_custom_call.1} parent=11 // pred_check_branch
          %274 = sbr.rel (%p272) target = $region20
        $region19: #{tpu_custom_call.1} parent=11 // pred_region
          _
        $region20: #{tpu_custom_call.1} parent=11 // pred_fallthru
          _
        // Predicated region
        $region21: #{tpu_custom_call.1} parent=11 // pred_check
          %p275 = pneg %p113
        $region22: #{tpu_custom_call.1} parent=11 // pred_check_branch
          %277 = sbr.rel (%p275) target = $region24
        $region23: #{tpu_custom_call.1} parent=11 // pred_region
          %s279 = ssub.s32 9216, 9216
          %280 = vsyncadd [#allocation7], %s279
          %s281 = sshll.u32 [#allocation8], 4
          %s282 = int_to_ptr.vmem [resolvable:$true] %s281
          %287 = dma.hbm_to_vmem [thread:$0]  %s3, 9216, %s282, [#allocation7], 64, 64, 4
        $region24: #{tpu_custom_call.1} parent=11 // pred_fallthru
          _
        // Predicated region
        $region25: #{tpu_custom_call.1} parent=11 // pred_check
          %p288 = pneg %p134
        $region26: #{tpu_custom_call.1} parent=11 // pred_check_branch
          %290 = sbr.rel (%p288) target = $region28
        $region27: #{tpu_custom_call.1} parent=11 // pred_region
          _
        $region28: #{tpu_custom_call.1} parent=11 // pred_fallthru
          _
        // Predicated region
        $region29: #{tpu_custom_call.1} parent=11 // pred_check
          %p291 = pneg %p155
        $region30: #{tpu_custom_call.1} parent=11 // pred_check_branch
          %293 = sbr.rel (%p291) target = $region32
        $region31: #{tpu_custom_call.1} parent=11 // pred_region
          %s295 = ssub.s32 1024, 1024
          %296 = vsyncadd [#allocation10], %s295
          %s297 = sshll.u32 [#allocation9], 4
          %s298 = int_to_ptr.vmem [resolvable:$true] %s297
          %303 = dma.hbm_to_vmem [thread:$0]  %s5, 1024, %s298, [#allocation10], 64, 64, 4
        $region32: #{tpu_custom_call.1} parent=11 // pred_fallthru
          _
        // Predicated region
        $region33: #{tpu_custom_call.1} parent=11 // pred_check
          %p304 = pneg %p176
        $region34: #{tpu_custom_call.1} parent=11 // pred_check_branch
          %306 = sbr.rel (%p304) target = $region36
        $region35: #{tpu_custom_call.1} parent=11 // pred_region
          _
        $region36: #{tpu_custom_call.1} parent=11 // pred_fallthru
          _
        // Predicated region
        $region37: #{tpu_custom_call.1} parent=11 // pred_check
          %p307 = pneg %p197
        $region38: #{tpu_custom_call.1} parent=11 // pred_check_branch
          %309 = sbr.rel (%p307) target = $region40
        $region39: #{tpu_custom_call.1} parent=11 // pred_region
          %s311 = ssub.s32 1024, 1024
          %312 = vsyncadd [#allocation10], %s311
          %s313 = sshll.u32 [#allocation11], 4
          %s314 = int_to_ptr.vmem [resolvable:$true] %s313
          %319 = dma.hbm_to_vmem [thread:$0]  %s7, 1024, %s314, [#allocation10], 64, 64, 4
        $region40: #{tpu_custom_call.1} parent=11 // pred_fallthru
          _
        // Predicated region
        $region41: #{tpu_custom_call.1} parent=11 // pred_check
          %p320 = pneg %p218
        $region42: #{tpu_custom_call.1} parent=11 // pred_check_branch
          %322 = sbr.rel (%p320) target = $region44
        $region43: #{tpu_custom_call.1} parent=11 // pred_region
          %s324 = ssub.s32 1024, 1024
          %325 = vsyncadd [#allocation13], %s324
          %s326 = sshll.u32 [#allocation12], 4
          %s327 = int_to_ptr.vmem [resolvable:$true] %s326
          %332 = dma.hbm_to_vmem [thread:$0]  %s8, 1024, %s327, [#allocation13], 64, 64, 4
        $region44: #{tpu_custom_call.1} parent=11 // pred_fallthru
          _
      $region12: #{tpu_custom_call.1} parent=5 // pred_fallthru
        _
      %p333 = scmp.lt.s32.totalorder %s24, 2
      // Predicated region
      $region45: #{tpu_custom_call.1} parent=5 // pred_check
        %p334 = pneg %p333
      $region46: #{tpu_custom_call.1} parent=5 // pred_check_branch
        %336 = sbr.rel (%p334) target = $region48
      $region47: #{tpu_custom_call.1} parent=5 // pred_region
        // Predicated region
        $region49: #{tpu_custom_call.1} parent=47 // pred_check
          %p337 = pneg %p44
        $region50: #{tpu_custom_call.1} parent=47 // pred_check_branch
          %339 = sbr.rel (%p337) target = $region52
        $region51: #{tpu_custom_call.1} parent=47 // pred_region
          %s340 = sand.u32 %s34, 1
          %s341 = scalar_lea.sflag [#allocation4], %s340
          %s342 = sand.u32 %s34, 1
          %s343 = smul.addr %s342, 64
          %s344 = scalar_lea.vmem [#allocation3], %s343
          %s346 = ssub.s32 1024, 1024
          %347 = vsyncadd %s341, %s346
          %s348 = smul.addr %s24, 8
          %s349 = smul.addr %s348, 128
          %s350 = scalar_lea.hbm %s0, %s349
          %s351 = sshll.u32 %s344, 4
          %s352 = int_to_ptr.vmem [resolvable:$true] %s351
          %357 = dma.hbm_to_vmem [thread:$0]  %s350, 1024, %s352, %s341, 128, 128, 8
        $region52: #{tpu_custom_call.1} parent=47 // pred_fallthru
          _
      $region48: #{tpu_custom_call.1} parent=5 // pred_fallthru
        _
      %p358 = scmp.le.s32.totalorder 1, %s24
      %p359 = scmp.lt.s32.totalorder %s24, 3
      %p360 = pnand %p358, %p359
      %p361 = pneg %p360
      // Predicated region
      $region53: #{tpu_custom_call.1} parent=5 // pred_check
        _
      $region54: #{tpu_custom_call.1} parent=5 // pred_check_branch
        %363 = sbr.rel (%p360) target = $region56
      $region55: #{tpu_custom_call.1} parent=5 // pred_region
        %s364 = ssub.s32 %s24, 1
        %s365 = sand.u32 %s37, 1
        %s366 = scalar_lea.sflag [#allocation4], %s365
        %s367 = sand.u32 %s37, 1
        %s368 = smul.addr %s367, 64
        %s369 = scalar_lea.vmem [#allocation3], %s368
        // Predicated region
        $region57: #{tpu_custom_call.1} parent=55 // pred_check
          %p370 = pneg %p50
        $region58: #{tpu_custom_call.1} parent=55 // pred_check_branch
          %372 = sbr.rel (%p370) target = $region60
        $region59: #{tpu_custom_call.1} parent=55 // pred_region
          %373 = dma.done %s366, 1024
        $region60: #{tpu_custom_call.1} parent=55 // pred_fallthru
          _
        // Predicated region
        $region61: #{tpu_custom_call.1} parent=55 // pred_check
          %p374 = pneg %p71
        $region62: #{tpu_custom_call.1} parent=55 // pred_check_branch
          %376 = sbr.rel (%p374) target = $region64
        $region63: #{tpu_custom_call.1} parent=55 // pred_region
          %377 = dma.done [#allocation7], 1024
        $region64: #{tpu_custom_call.1} parent=55 // pred_fallthru
          _
        // Predicated region
        $region65: #{tpu_custom_call.1} parent=55 // pred_check
          %p378 = pneg %p113
        $region66: #{tpu_custom_call.1} parent=55 // pred_check_branch
          %380 = sbr.rel (%p378) target = $region68
        $region67: #{tpu_custom_call.1} parent=55 // pred_region
          %381 = dma.done [#allocation7], 9216
        $region68: #{tpu_custom_call.1} parent=55 // pred_fallthru
          _
        // Predicated region
        $region69: #{tpu_custom_call.1} parent=55 // pred_check
          %p382 = pneg %p155
        $region70: #{tpu_custom_call.1} parent=55 // pred_check_branch
          %384 = sbr.rel (%p382) target = $region72
        $region71: #{tpu_custom_call.1} parent=55 // pred_region
          %385 = dma.done [#allocation10], 1024
        $region72: #{tpu_custom_call.1} parent=55 // pred_fallthru
          _
        // Predicated region
        $region73: #{tpu_custom_call.1} parent=55 // pred_check
          %p386 = pneg %p197
        $region74: #{tpu_custom_call.1} parent=55 // pred_check_branch
          %388 = sbr.rel (%p386) target = $region76
        $region75: #{tpu_custom_call.1} parent=55 // pred_region
          %389 = dma.done [#allocation10], 1024
        $region76: #{tpu_custom_call.1} parent=55 // pred_fallthru
          _
        // Predicated region
        $region77: #{tpu_custom_call.1} parent=55 // pred_check
          %p390 = pneg %p218
        $region78: #{tpu_custom_call.1} parent=55 // pred_check_branch
          %392 = sbr.rel (%p390) target = $region80
        $region79: #{tpu_custom_call.1} parent=55 // pred_region
          %393 = dma.done [#allocation13], 1024
        $region80: #{tpu_custom_call.1} parent=55 // pred_fallthru
          _
        %s394 = sand.u32 %s37, 1
        %s395 = scalar_lea.sflag [#allocation4], %s394
        %s396 = sand.u32 %s37, 1
        %s397 = smul.addr %s396, 64
        %s398 = scalar_lea.vmem [#allocation3], %s397
        %p399 = pneg %p50
        %p400 = pneg %p47
        %p401 = pneg %p71
        %p402 = pneg %p68
        %p403 = pneg %p92
        %p404 = pneg %p89
        %p405 = pneg %p113
        %p406 = pneg %p110
        %p407 = pneg %p134
        %p408 = pneg %p131
        %p409 = pneg %p155
        %p410 = pneg %p152
        %p411 = pneg %p176
        %p412 = pneg %p173
        %p413 = pneg %p197
        %p414 = pneg %p194
        %p415 = pneg %p218
        %p416 = pneg %p215
        %p417 = pneg %p244
        %p418 = pneg %p241
        %s419 = sand.u32 %s231, 1
        %s420 = scalar_lea.sflag [#allocation5], %s419
        %s421 = sand.u32 %s231, 1
        %s422 = smul.addr %s421, 64
        %s423 = scalar_lea.vmem [#allocation14], %s422
        %v425 = vld [vmem:[%s369] sm:$0xff]
        %v426 = vld [vmem:[%s369 + $0x8] sm:$0xff]
        %v427 = vld [vmem:[%s369 + $0x10] sm:$0xff]
        %v428 = vld [vmem:[%s369 + $0x18] sm:$0xff]
        %v429 = vld [vmem:[%s369 + $0x20] sm:$0xff]
        %v430 = vld [vmem:[%s369 + $0x28] sm:$0xff]
        %v431 = vld [vmem:[%s369 + $0x30] sm:$0xff]
        %v432 = vld [vmem:[%s369 + $0x38] sm:$0xff]
        %v433 = vpack.c.bf16 %v426, %v425
        %v434 = vpack.c.bf16 %v428, %v427
        %v435 = vpack.c.bf16 %v430, %v429
        %v436 = vpack.c.bf16 %v432, %v431
        %v437 = vld [vmem:[#allocation6] sm:$0xf]
        %v438 = vld [vmem:[#allocation6 + $0x4] sm:$0xf]
        %v439 = vld [vmem:[#allocation6 + $0x8] sm:$0xf]
        %v440 = vld [vmem:[#allocation6 + $0xc] sm:$0xf]
        %v441 = vld [vmem:[#allocation6 + $0x10] sm:$0xf]
        %v442 = vld [vmem:[#allocation6 + $0x14] sm:$0xf]
        %v443 = vld [vmem:[#allocation6 + $0x18] sm:$0xf]
        %v444 = vld [vmem:[#allocation6 + $0x1c] sm:$0xf]
        %v445 = vld [vmem:[#allocation6 + $0x20] sm:$0xf]
        %v446 = vld [vmem:[#allocation6 + $0x24] sm:$0xf]
        %v447 = vld [vmem:[#allocation6 + $0x28] sm:$0xf]
        %v448 = vld [vmem:[#allocation6 + $0x2c] sm:$0xf]
        %v449 = vld [vmem:[#allocation6 + $0x30] sm:$0xf]
        %v450 = vld [vmem:[#allocation6 + $0x34] sm:$0xf]
        %v451 = vld [vmem:[#allocation6 + $0x38] sm:$0xf]
        %v452 = vld [vmem:[#allocation6 + $0x3c] sm:$0xf]
        %v453 = vld [vmem:[%s2] sm:$0x1]
        %v455 = vlaneseq
        %v456 = vshrl.u32 %v455, 7
        %v457 = vsub.s32 0, %v456
        %v458 = vrot.slane %v453, %v457
        %v476 = vunpack.c.l.b16 %v437
        %v477 = vunpack.c.l.b16 %v438
        %v478 = vunpack.c.l.b16 %v439
        %v479 = vunpack.c.l.b16 %v440
        %v480 = vunpack.c.l.b16 %v441
        %v481 = vunpack.c.l.b16 %v442
        %v482 = vunpack.c.l.b16 %v443
        %v483 = vunpack.c.l.b16 %v444
        %v484 = vunpack.c.l.b16 %v445
        %v485 = vunpack.c.l.b16 %v446
        %v486 = vunpack.c.l.b16 %v447
        %v487 = vunpack.c.l.b16 %v448
        %v488 = vunpack.c.l.b16 %v449
        %v489 = vunpack.c.l.b16 %v450
        %v490 = vunpack.c.l.b16 %v451
        %v491 = vunpack.c.l.b16 %v452
        %v492 = vpack.c.b16 %v477, %v476
        %v493 = vpack.c.b16 %v479, %v478
        %v494 = vpack.c.b16 %v481, %v480
        %v495 = vpack.c.b16 %v483, %v482
        %v496 = vpack.c.b16 %v485, %v484
        %v497 = vpack.c.b16 %v487, %v486
        %v498 = vpack.c.b16 %v489, %v488
        %v499 = vpack.c.b16 %v491, %v490
        %508 = vmatprep.subr.bf16.mxu0 0
        %509 = vmatpush1.bf16.msra.mxu0 %v499
        %510 = vmatprep.subr.bf16.mxu0 0
        %511 = vmatpush1.bf16.msra.mxu0 %v498
        %512 = vmatprep.subr.bf16.mxu0 0
        %513 = vmatpush1.bf16.msra.mxu0 %v497
        %514 = vmatprep.subr.bf16.mxu0 0
        %515 = vmatpush1.bf16.msra.mxu0 %v496
        %516 = vmatprep.subr.bf16.mxu0 0
        %517 = vmatpush1.bf16.msra.mxu0 %v495
        %518 = vmatprep.subr.bf16.mxu0 0
        %519 = vmatpush1.bf16.msra.mxu0 %v494
        %520 = vmatprep.subr.bf16.mxu0 0
        %521 = vmatpush1.bf16.msra.mxu0 %v493
        %522 = vmatprep.subr.bf16.mxu0 0
        %523 = vmatpush1.bf16.msra.mxu0 %v492
        %524 = vmatprep.subr.bf16.mxu0 0
        %525 = vmatpush2.bf16.msra.mxu0 0
        %526 = vmatprep.subr.bf16.mxu0 0
        %527 = vmatpush2.bf16.msra.mxu0 0
        %528 = vmatprep.subr.bf16.mxu0 0
        %529 = vmatpush2.bf16.msra.mxu0 0
        %530 = vmatprep.subr.bf16.mxu0 0
        %531 = vmatpush2.bf16.msra.mxu0 0
        %532 = vmatprep.subr.bf16.mxu0 0
        %533 = vmatpush2.bf16.msra.mxu0 0
        %534 = vmatprep.subr.bf16.mxu0 0
        %535 = vmatpush2.bf16.msra.mxu0 0
        %536 = vmatprep.subr.bf16.mxu0 0
        %537 = vmatpush2.bf16.msra.mxu0 0
        %538 = vmatprep.subr.bf16.mxu0 0
        %539 = vmatpush2.bf16.msra.mxu0 0
        %540 = vmatprep.mubr.bf16.mxu0 0
        %541 = vmatmul.mubr.bf16.gmra.mxu0 %v433
        %v542 = vpop.f32.mrf.mxu0
        %v543 = vadd.f32 %v458, %v542
        %v544 = vpop.f32.mrf.mxu0
        %v545 = vpop.f32.mrf.mxu0
        %v546 = vadd.f32 %v458, %v545
        %v547 = vpop.f32.mrf.mxu0
        %548 = vmatprep.mubr.bf16.mxu0 0
        %549 = vmatmul.mubr.bf16.gmra.mxu0 %v434
        %v550 = vpop.f32.mrf.mxu0
        %v551 = vadd.f32 %v458, %v550
        %v552 = vpop.f32.mrf.mxu0
        %v553 = vpop.f32.mrf.mxu0
        %v554 = vadd.f32 %v458, %v553
        %v555 = vpop.f32.mrf.mxu0
        %556 = vmatprep.mubr.bf16.mxu0 0
        %557 = vmatmul.mubr.bf16.gmra.mxu0 %v435
        %v558 = vpop.f32.mrf.mxu0
        %v559 = vadd.f32 %v458, %v558
        %v560 = vpop.f32.mrf.mxu0
        %v561 = vpop.f32.mrf.mxu0
        %v562 = vadd.f32 %v458, %v561
        %v563 = vpop.f32.mrf.mxu0
        %564 = vmatprep.mubr.bf16.mxu0 0
        %565 = vmatmul.mubr.bf16.gmra.mxu0 %v436
        %v566 = vpop.f32.mrf.mxu0
        %v567 = vadd.f32 %v458, %v566
        %v568 = vpop.f32.mrf.mxu0
        %v569 = vpop.f32.mrf.mxu0
        %v570 = vadd.f32 %v458, %v569
        %v571 = vpop.f32.mrf.mxu0
        %572 = vdwg.mxu0
        %v573 = vmax.f32 %v543, 0.0
        %v574 = vmax.f32 %v546, 0.0
        %v575 = vmax.f32 %v551, 0.0
        %v576 = vmax.f32 %v554, 0.0
        %v577 = vmax.f32 %v559, 0.0
        %v578 = vmax.f32 %v562, 0.0
        %v579 = vmax.f32 %v567, 0.0
        %v580 = vmax.f32 %v570, 0.0
        %v581 = vpack.c.bf16 %v573, %v573
        %v582 = vpack.c.bf16 %v574, %v574
        %v583 = vpack.c.bf16 %v575, %v575
        %v584 = vpack.c.bf16 %v576, %v576
        %v585 = vpack.c.bf16 %v577, %v577
        %v586 = vpack.c.bf16 %v578, %v578
        %v587 = vpack.c.bf16 %v579, %v579
        %v588 = vpack.c.bf16 %v580, %v580
        %v590 = vshrl.u32 %v581, 16
        %v592 = vrot.slane %v590, 7
        %v593 = vshll.u32 %v581, 16
        %v595 = vor.u32 %v592, %v593
        %v597 = vshrl.u32 %v582, 16
        %v599 = vrot.slane %v597, 7
        %v600 = vshll.u32 %v582, 16
        %v602 = vor.u32 %v599, %v600
        %v604 = vshrl.u32 %v583, 16
        %v606 = vrot.slane %v604, 7
        %v607 = vshll.u32 %v583, 16
        %v609 = vor.u32 %v606, %v607
        %v611 = vshrl.u32 %v584, 16
        %v613 = vrot.slane %v611, 7
        %v614 = vshll.u32 %v584, 16
        %v616 = vor.u32 %v613, %v614
        %v618 = vshrl.u32 %v585, 16
        %v620 = vrot.slane %v618, 7
        %v621 = vshll.u32 %v585, 16
        %v623 = vor.u32 %v620, %v621
        %v625 = vshrl.u32 %v586, 16
        %v627 = vrot.slane %v625, 7
        %v628 = vshll.u32 %v586, 16
        %v630 = vor.u32 %v627, %v628
        %v632 = vshrl.u32 %v587, 16
        %v634 = vrot.slane %v632, 7
        %v635 = vshll.u32 %v587, 16
        %v637 = vor.u32 %v634, %v635
        %v639 = vshrl.u32 %v588, 16
        %v641 = vrot.slane %v639, 7
        %v642 = vshll.u32 %v588, 16
        %v644 = vor.u32 %v641, %v642
        %vm653 = vcmask 1040384
        %vm654 = vsmask.f32 256
        %vm655 = vmand %vm653, %vm654
        %v656 = vsel %vm655, 0, %v595
        %v657 = vsel %vm655, 0, %v602
        %v658 = vsel %vm655, 0, %v609
        %v659 = vsel %vm655, 0, %v616
        %v660 = vsel %vm655, 0, %v623
        %v661 = vsel %vm655, 0, %v630
        %v662 = vsel %vm655, 0, %v637
        %v663 = vsel %vm655, 0, %v644
        %v664 = vrot.slane %v593, 1
        %v665 = vor.u32 %v590, %v664
        %v666 = vrot.slane %v600, 1
        %v667 = vor.u32 %v597, %v666
        %v668 = vrot.slane %v607, 1
        %v669 = vor.u32 %v604, %v668
        %v670 = vrot.slane %v614, 1
        %v671 = vor.u32 %v611, %v670
        %v672 = vrot.slane %v621, 1
        %v673 = vor.u32 %v618, %v672
        %v674 = vrot.slane %v628, 1
        %v675 = vor.u32 %v625, %v674
        %v676 = vrot.slane %v635, 1
        %v677 = vor.u32 %v632, %v676
        %v678 = vrot.slane %v642, 1
        %v679 = vor.u32 %v639, %v678
        %vm688 = vcmask 1043456
        %vm689 = vsmask.f32 3328
        %vm690 = vmand %vm688, %vm689
        %v691 = vsel %vm690, %v665, 0
        %v692 = vsel %vm690, %v667, 0
        %v693 = vsel %vm690, %v669, 0
        %v694 = vsel %vm690, %v671, 0
        %v695 = vsel %vm690, %v673, 0
        %v696 = vsel %vm690, %v675, 0
        %v697 = vsel %vm690, %v677, 0
        %v698 = vsel %vm690, %v679, 0
        %699 = vst [vmem:[#allocation2] sm:$0xff] 0
        %700 = vst [vmem:[#allocation2 + $0x8] sm:$0xf] 0
        %s701 = scalar_lea.vmem [#allocation2], 108
        %702 = vst [vmem:[%s701] sm:$0xff] 0
        %703 = vst [vmem:[%s701 + $0x8] sm:$0xf] 0
        %v728 = vunpack.c.l.b16 %v656
        %v729 = vunpack.c.l.b16 %v581
        %v730 = vunpack.c.l.b16 %v691
        %v731 = vunpack.c.l.b16 %v657
        %v732 = vunpack.c.l.b16 %v582
        %v733 = vunpack.c.l.b16 %v692
        %v734 = vunpack.c.l.b16 %v658
        %v735 = vunpack.c.l.b16 %v583
        %v736 = vunpack.c.l.b16 %v693
        %v737 = vunpack.c.l.b16 %v659
        %v738 = vunpack.c.l.b16 %v584
        %v739 = vunpack.c.l.b16 %v694
        %v740 = vunpack.c.l.b16 %v660
        %v741 = vunpack.c.l.b16 %v585
        %v742 = vunpack.c.l.b16 %v695
        %v743 = vunpack.c.l.b16 %v661
        %v744 = vunpack.c.l.b16 %v586
        %v745 = vunpack.c.l.b16 %v696
        %v746 = vunpack.c.l.b16 %v662
        %v747 = vunpack.c.l.b16 %v587
        %v748 = vunpack.c.l.b16 %v697
        %v749 = vunpack.c.l.b16 %v663
        %v750 = vunpack.c.l.b16 %v588
        %v751 = vunpack.c.l.b16 %v698
        %v752 = vpack.c.b16 %v729, %v728
        %v753 = vpack.c.b16 %v730, %v730
        %v754 = vpack.c.b16 %v732, %v731
        %v755 = vpack.c.b16 %v733, %v733
        %v756 = vpack.c.b16 %v735, %v734
        %v757 = vpack.c.b16 %v736, %v736
        %v758 = vpack.c.b16 %v738, %v737
        %v759 = vpack.c.b16 %v739, %v739
        %v760 = vpack.c.b16 %v741, %v740
        %v761 = vpack.c.b16 %v742, %v742
        %v762 = vpack.c.b16 %v744, %v743
        %v763 = vpack.c.b16 %v745, %v745
        %v764 = vpack.c.b16 %v747, %v746
        %v765 = vpack.c.b16 %v748, %v748
        %v766 = vpack.c.b16 %v750, %v749
        %v767 = vpack.c.b16 %v751, %v751
        %s784 = scalar_lea.vmem [#allocation2], 12
        %785 = vst [vmem:[%s784] sm:$0xff] %v752
        %786 = vst [vmem:[%s784 + $0x8] sm:$0xf] %v753
        %787 = vst [vmem:[%s784 + $0xc] sm:$0xff] %v754
        %788 = vst [vmem:[%s784 + $0x14] sm:$0xf] %v755
        %789 = vst [vmem:[%s784 + $0x18] sm:$0xff] %v756
        %790 = vst [vmem:[%s784 + $0x20] sm:$0xf] %v757
        %791 = vst [vmem:[%s784 + $0x24] sm:$0xff] %v758
        %792 = vst [vmem:[%s784 + $0x2c] sm:$0xf] %v759
        %793 = vst [vmem:[%s784 + $0x30] sm:$0xff] %v760
        %794 = vst [vmem:[%s784 + $0x38] sm:$0xf] %v761
        %795 = vst [vmem:[%s784 + $0x3c] sm:$0xff] %v762
        %796 = vst [vmem:[%s784 + $0x44] sm:$0xf] %v763
        %797 = vst [vmem:[%s784 + $0x48] sm:$0xff] %v764
        %798 = vst [vmem:[%s784 + $0x50] sm:$0xf] %v765
        %799 = vst [vmem:[%s784 + $0x54] sm:$0xff] %v766
        %800 = vst [vmem:[%s784 + $0x5c] sm:$0xf] %v767
        %v801 = vld [vmem:[#allocation2] sm:$0xff]
        %v802 = vld [vmem:[#allocation2 + $0x8] sm:$0xf]
        %v803 = vld [vmem:[#allocation2 + $0xc] sm:$0xff]
        %v804 = vld [vmem:[#allocation2 + $0x14] sm:$0xf]
        %v805 = vld [vmem:[#allocation2 + $0x18] sm:$0xff]
        %v806 = vld [vmem:[#allocation2 + $0x20] sm:$0xf]
        %v807 = vld [vmem:[#allocation2 + $0x24] sm:$0xff]
        %v808 = vld [vmem:[#allocation2 + $0x2c] sm:$0xf]
        %v809 = vld [vmem:[#allocation2 + $0x30] sm:$0xff]
        %v810 = vld [vmem:[#allocation2 + $0x38] sm:$0xf]
        %v811 = vld [vmem:[#allocation2 + $0x3c] sm:$0xff]
        %v812 = vld [vmem:[#allocation2 + $0x44] sm:$0xf]
        %v813 = vld [vmem:[#allocation2 + $0x48] sm:$0xff]
        %v814 = vld [vmem:[#allocation2 + $0x50] sm:$0xf]
        %v815 = vld [vmem:[#allocation2 + $0x54] sm:$0xff]
        %v816 = vld [vmem:[#allocation2 + $0x5c] sm:$0xf]
        %v817 = vld [vmem:[#allocation8] sm:$0xf]
        %v818 = vld [vmem:[#allocation8 + $0x4] sm:$0xf]
        %v819 = vld [vmem:[#allocation8 + $0x8] sm:$0xf]
        %v820 = vld [vmem:[#allocation8 + $0xc] sm:$0xf]
        %v821 = vld [vmem:[#allocation8 + $0x10] sm:$0xf]
        %v822 = vld [vmem:[#allocation8 + $0x14] sm:$0xf]
        %v823 = vld [vmem:[#allocation8 + $0x18] sm:$0xf]
        %v824 = vld [vmem:[#allocation8 + $0x1c] sm:$0xf]
        %v825 = vld [vmem:[#allocation8 + $0x20] sm:$0xf]
        %v826 = vld [vmem:[#allocation8 + $0x24] sm:$0xf]
        %v827 = vld [vmem:[#allocation8 + $0x28] sm:$0xf]
        %v828 = vld [vmem:[#allocation8 + $0x2c] sm:$0xf]
        %v829 = vld [vmem:[#allocation8 + $0x30] sm:$0xf]
        %v830 = vld [vmem:[#allocation8 + $0x34] sm:$0xf]
        %v831 = vld [vmem:[#allocation8 + $0x38] sm:$0xf]
        %v832 = vld [vmem:[#allocation8 + $0x3c] sm:$0xf]
        %v833 = vld [vmem:[#allocation8 + $0x40] sm:$0xf]
        %v834 = vld [vmem:[#allocation8 + $0x44] sm:$0xf]
        %v835 = vld [vmem:[#allocation8 + $0x48] sm:$0xf]
        %v836 = vld [vmem:[#allocation8 + $0x4c] sm:$0xf]
        %v837 = vld [vmem:[#allocation8 + $0x50] sm:$0xf]
        %v838 = vld [vmem:[#allocation8 + $0x54] sm:$0xf]
        %v839 = vld [vmem:[#allocation8 + $0x58] sm:$0xf]
        %v840 = vld [vmem:[#allocation8 + $0x5c] sm:$0xf]
        %v841 = vld [vmem:[#allocation8 + $0x60] sm:$0xf]
        %v842 = vld [vmem:[#allocation8 + $0x64] sm:$0xf]
        %v843 = vld [vmem:[#allocation8 + $0x68] sm:$0xf]
        %v844 = vld [vmem:[#allocation8 + $0x6c] sm:$0xf]
        %v845 = vld [vmem:[#allocation8 + $0x70] sm:$0xf]
        %v846 = vld [vmem:[#allocation8 + $0x74] sm:$0xf]
        %v847 = vld [vmem:[#allocation8 + $0x78] sm:$0xf]
        %v848 = vld [vmem:[#allocation8 + $0x7c] sm:$0xf]
        %v849 = vld [vmem:[#allocation8 + $0x80] sm:$0xf]
        %v850 = vld [vmem:[#allocation8 + $0x84] sm:$0xf]
        %v851 = vld [vmem:[#allocation8 + $0x88] sm:$0xf]
        %v852 = vld [vmem:[#allocation8 + $0x8c] sm:$0xf]
        %v853 = vld [vmem:[#allocation8 + $0x90] sm:$0xf]
        %v854 = vld [vmem:[#allocation8 + $0x94] sm:$0xf]
        %v855 = vld [vmem:[#allocation8 + $0x98] sm:$0xf]
        %v856 = vld [vmem:[#allocation8 + $0x9c] sm:$0xf]
        %v857 = vld [vmem:[#allocation8 + $0xa0] sm:$0xf]
        %v858 = vld [vmem:[#allocation8 + $0xa4] sm:$0xf]
        %v859 = vld [vmem:[#allocation8 + $0xa8] sm:$0xf]
        %v860 = vld [vmem:[#allocation8 + $0xac] sm:$0xf]
        %v861 = vld [vmem:[#allocation8 + $0xb0] sm:$0xf]
        %v862 = vld [vmem:[#allocation8 + $0xb4] sm:$0xf]
        %v863 = vld [vmem:[#allocation8 + $0xb8] sm:$0xf]
        %v864 = vld [vmem:[#allocation8 + $0xbc] sm:$0xf]
        %v865 = vld [vmem:[%s784] sm:$0xff]
        %v866 = vld [vmem:[%s784 + $0x8] sm:$0xf]
        %v867 = vld [vmem:[%s784 + $0xc] sm:$0xff]
        %v868 = vld [vmem:[%s784 + $0x14] sm:$0xf]
        %v869 = vld [vmem:[%s784 + $0x18] sm:$0xff]
        %v870 = vld [vmem:[%s784 + $0x20] sm:$0xf]
        %v871 = vld [vmem:[%s784 + $0x24] sm:$0xff]
        %v872 = vld [vmem:[%s784 + $0x2c] sm:$0xf]
        %v873 = vld [vmem:[%s784 + $0x30] sm:$0xff]
        %v874 = vld [vmem:[%s784 + $0x38] sm:$0xf]
        %v875 = vld [vmem:[%s784 + $0x3c] sm:$0xff]
        %v876 = vld [vmem:[%s784 + $0x44] sm:$0xf]
        %v877 = vld [vmem:[%s784 + $0x48] sm:$0xff]
        %v878 = vld [vmem:[%s784 + $0x50] sm:$0xf]
        %v879 = vld [vmem:[%s784 + $0x54] sm:$0xff]
        %v880 = vld [vmem:[%s784 + $0x5c] sm:$0xf]
        %s881 = scalar_lea.vmem [#allocation8], 192
        %v882 = vld [vmem:[%s881] sm:$0xf]
        %v883 = vld [vmem:[%s881 + $0x4] sm:$0xf]
        %v884 = vld [vmem:[%s881 + $0x8] sm:$0xf]
        %v885 = vld [vmem:[%s881 + $0xc] sm:$0xf]
        %v886 = vld [vmem:[%s881 + $0x10] sm:$0xf]
        %v887 = vld [vmem:[%s881 + $0x14] sm:$0xf]
        %v888 = vld [vmem:[%s881 + $0x18] sm:$0xf]
        %v889 = vld [vmem:[%s881 + $0x1c] sm:$0xf]
        %v890 = vld [vmem:[%s881 + $0x20] sm:$0xf]
        %v891 = vld [vmem:[%s881 + $0x24] sm:$0xf]
        %v892 = vld [vmem:[%s881 + $0x28] sm:$0xf]
        %v893 = vld [vmem:[%s881 + $0x2c] sm:$0xf]
        %v894 = vld [vmem:[%s881 + $0x30] sm:$0xf]
        %v895 = vld [vmem:[%s881 + $0x34] sm:$0xf]
        %v896 = vld [vmem:[%s881 + $0x38] sm:$0xf]
        %v897 = vld [vmem:[%s881 + $0x3c] sm:$0xf]
        %v898 = vld [vmem:[%s881 + $0x40] sm:$0xf]
        %v899 = vld [vmem:[%s881 + $0x44] sm:$0xf]
        %v900 = vld [vmem:[%s881 + $0x48] sm:$0xf]
        %v901 = vld [vmem:[%s881 + $0x4c] sm:$0xf]
        %v902 = vld [vmem:[%s881 + $0x50] sm:$0xf]
        %v903 = vld [vmem:[%s881 + $0x54] sm:$0xf]
        %v904 = vld [vmem:[%s881 + $0x58] sm:$0xf]
        %v905 = vld [vmem:[%s881 + $0x5c] sm:$0xf]
        %v906 = vld [vmem:[%s881 + $0x60] sm:$0xf]
        %v907 = vld [vmem:[%s881 + $0x64] sm:$0xf]
        %v908 = vld [vmem:[%s881 + $0x68] sm:$0xf]
        %v909 = vld [vmem:[%s881 + $0x6c] sm:$0xf]
        %v910 = vld [vmem:[%s881 + $0x70] sm:$0xf]
        %v911 = vld [vmem:[%s881 + $0x74] sm:$0xf]
        %v912 = vld [vmem:[%s881 + $0x78] sm:$0xf]
        %v913 = vld [vmem:[%s881 + $0x7c] sm:$0xf]
        %v914 = vld [vmem:[%s881 + $0x80] sm:$0xf]
        %v915 = vld [vmem:[%s881 + $0x84] sm:$0xf]
        %v916 = vld [vmem:[%s881 + $0x88] sm:$0xf]
        %v917 = vld [vmem:[%s881 + $0x8c] sm:$0xf]
        %v918 = vld [vmem:[%s881 + $0x90] sm:$0xf]
        %v919 = vld [vmem:[%s881 + $0x94] sm:$0xf]
        %v920 = vld [vmem:[%s881 + $0x98] sm:$0xf]
        %v921 = vld [vmem:[%s881 + $0x9c] sm:$0xf]
        %v922 = vld [vmem:[%s881 + $0xa0] sm:$0xf]
        %v923 = vld [vmem:[%s881 + $0xa4] sm:$0xf]
        %v924 = vld [vmem:[%s881 + $0xa8] sm:$0xf]
        %v925 = vld [vmem:[%s881 + $0xac] sm:$0xf]
        %v926 = vld [vmem:[%s881 + $0xb0] sm:$0xf]
        %v927 = vld [vmem:[%s881 + $0xb4] sm:$0xf]
        %v928 = vld [vmem:[%s881 + $0xb8] sm:$0xf]
        %v929 = vld [vmem:[%s881 + $0xbc] sm:$0xf]
        %v946 = vunpack.c.l.b16 %v865
        %v947 = vunpack.c.h.b16 %v865
        %v948 = vunpack.c.l.b16 %v866
        %v949 = vunpack.c.l.b16 %v867
        %v950 = vunpack.c.h.b16 %v867
        %v951 = vunpack.c.l.b16 %v868
        %v952 = vunpack.c.l.b16 %v869
        %v953 = vunpack.c.h.b16 %v869
        %v954 = vunpack.c.l.b16 %v870
        %v955 = vunpack.c.l.b16 %v871
        %v956 = vunpack.c.h.b16 %v871
        %v957 = vunpack.c.l.b16 %v872
        %v958 = vunpack.c.l.b16 %v873
        %v959 = vunpack.c.h.b16 %v873
        %v960 = vunpack.c.l.b16 %v874
        %v961 = vunpack.c.l.b16 %v875
        %v962 = vunpack.c.h.b16 %v875
        %v963 = vunpack.c.l.b16 %v876
        %v964 = vunpack.c.l.b16 %v877
        %v965 = vunpack.c.h.b16 %v877
        %v966 = vunpack.c.l.b16 %v878
        %v967 = vunpack.c.l.b16 %v879
        %v968 = vunpack.c.h.b16 %v879
        %v969 = vunpack.c.l.b16 %v880
        %v970 = vpack.c.b16 %v949, %v946
        %v971 = vpack.c.b16 %v950, %v947
        %v972 = vpack.c.b16 %v951, %v948
        %v973 = vpack.c.b16 %v955, %v952
        %v974 = vpack.c.b16 %v956, %v953
        %v975 = vpack.c.b16 %v957, %v954
        %v976 = vpack.c.b16 %v961, %v958
        %v977 = vpack.c.b16 %v962, %v959
        %v978 = vpack.c.b16 %v963, %v960
        %v979 = vpack.c.b16 %v967, %v964
        %v980 = vpack.c.b16 %v968, %v965
        %v981 = vpack.c.b16 %v969, %v966
        %v1042 = vunpack.c.l.b16 %v882
        %v1043 = vunpack.c.l.b16 %v883
        %v1044 = vunpack.c.l.b16 %v884
        %v1045 = vunpack.c.l.b16 %v885
        %v1046 = vunpack.c.l.b16 %v886
        %v1047 = vunpack.c.l.b16 %v887
        %v1048 = vunpack.c.l.b16 %v888
        %v1049 = vunpack.c.l.b16 %v889
        %v1050 = vunpack.c.l.b16 %v890
        %v1051 = vunpack.c.l.b16 %v891
        %v1052 = vunpack.c.l.b16 %v892
        %v1053 = vunpack.c.l.b16 %v893
        %v1054 = vunpack.c.l.b16 %v894
        %v1055 = vunpack.c.l.b16 %v895
        %v1056 = vunpack.c.l.b16 %v896
        %v1057 = vunpack.c.l.b16 %v897
        %v1058 = vunpack.c.l.b16 %v898
        %v1059 = vunpack.c.l.b16 %v899
        %v1060 = vunpack.c.l.b16 %v900
        %v1061 = vunpack.c.l.b16 %v901
        %v1062 = vunpack.c.l.b16 %v902
        %v1063 = vunpack.c.l.b16 %v903
        %v1064 = vunpack.c.l.b16 %v904
        %v1065 = vunpack.c.l.b16 %v905
        %v1066 = vunpack.c.l.b16 %v906
        %v1067 = vunpack.c.l.b16 %v907
        %v1068 = vunpack.c.l.b16 %v908
        %v1069 = vunpack.c.l.b16 %v909
        %v1070 = vunpack.c.l.b16 %v910
        %v1071 = vunpack.c.l.b16 %v911
        %v1072 = vunpack.c.l.b16 %v912
        %v1073 = vunpack.c.l.b16 %v913
        %v1074 = vunpack.c.l.b16 %v914
        %v1075 = vunpack.c.l.b16 %v915
        %v1076 = vunpack.c.l.b16 %v916
        %v1077 = vunpack.c.l.b16 %v917
        %v1078 = vunpack.c.l.b16 %v918
        %v1079 = vunpack.c.l.b16 %v919
        %v1080 = vunpack.c.l.b16 %v920
        %v1081 = vunpack.c.l.b16 %v921
        %v1082 = vunpack.c.l.b16 %v922
        %v1083 = vunpack.c.l.b16 %v923
        %v1084 = vunpack.c.l.b16 %v924
        %v1085 = vunpack.c.l.b16 %v925
        %v1086 = vunpack.c.l.b16 %v926
        %v1087 = vunpack.c.l.b16 %v927
        %v1088 = vunpack.c.l.b16 %v928
        %v1089 = vunpack.c.l.b16 %v929
        %v1090 = vpack.c.b16 %v1043, %v1042
        %v1091 = vpack.c.b16 %v1045, %v1044
        %v1092 = vpack.c.b16 %v1047, %v1046
        %v1093 = vpack.c.b16 %v1049, %v1048
        %v1094 = vpack.c.b16 %v1051, %v1050
        %v1095 = vpack.c.b16 %v1053, %v1052
        %v1096 = vpack.c.b16 %v1055, %v1054
        %v1097 = vpack.c.b16 %v1057, %v1056
        %v1098 = vpack.c.b16 %v1059, %v1058
        %v1099 = vpack.c.b16 %v1061, %v1060
        %v1100 = vpack.c.b16 %v1063, %v1062
        %v1101 = vpack.c.b16 %v1065, %v1064
        %v1102 = vpack.c.b16 %v1067, %v1066
        %v1103 = vpack.c.b16 %v1069, %v1068
        %v1104 = vpack.c.b16 %v1071, %v1070
        %v1105 = vpack.c.b16 %v1073, %v1072
        %v1106 = vpack.c.b16 %v1075, %v1074
        %v1107 = vpack.c.b16 %v1077, %v1076
        %v1108 = vpack.c.b16 %v1079, %v1078
        %v1109 = vpack.c.b16 %v1081, %v1080
        %v1110 = vpack.c.b16 %v1083, %v1082
        %v1111 = vpack.c.b16 %v1085, %v1084
        %v1112 = vpack.c.b16 %v1087, %v1086
        %v1113 = vpack.c.b16 %v1089, %v1088
        %1138 = vmatprep.subr.bf16.mxu0 0
        %1139 = vmatpush1.bf16.msra.mxu0 %v1097
        %1140 = vmatprep.subr.bf16.mxu0 0
        %1141 = vmatpush1.bf16.msra.mxu0 %v1096
        %1142 = vmatprep.subr.bf16.mxu0 0
        %1143 = vmatpush1.bf16.msra.mxu0 %v1095
        %1144 = vmatprep.subr.bf16.mxu0 0
        %1145 = vmatpush1.bf16.msra.mxu0 %v1094
        %1146 = vmatprep.subr.bf16.mxu0 0
        %1147 = vmatpush1.bf16.msra.mxu0 %v1093
        %1148 = vmatprep.subr.bf16.mxu0 0
        %1149 = vmatpush1.bf16.msra.mxu0 %v1092
        %1150 = vmatprep.subr.bf16.mxu0 0
        %1151 = vmatpush1.bf16.msra.mxu0 %v1091
        %1152 = vmatprep.subr.bf16.mxu0 0
        %1153 = vmatpush1.bf16.msra.mxu0 %v1090
        %1154 = vmatprep.subr.bf16.mxu0 0
        %1155 = vmatpush2.bf16.msra.mxu0 %v1105
        %1156 = vmatprep.subr.bf16.mxu0 0
        %1157 = vmatpush2.bf16.msra.mxu0 %v1104
        %1158 = vmatprep.subr.bf16.mxu0 0
        %1159 = vmatpush2.bf16.msra.mxu0 %v1103
        %1160 = vmatprep.subr.bf16.mxu0 0
        %1161 = vmatpush2.bf16.msra.mxu0 %v1102
        %1162 = vmatprep.subr.bf16.mxu0 0
        %1163 = vmatpush2.bf16.msra.mxu0 %v1101
        %1164 = vmatprep.subr.bf16.mxu0 0
        %1165 = vmatpush2.bf16.msra.mxu0 %v1100
        %1166 = vmatprep.subr.bf16.mxu0 0
        %1167 = vmatpush2.bf16.msra.mxu0 %v1099
        %1168 = vmatprep.subr.bf16.mxu0 0
        %1169 = vmatpush2.bf16.msra.mxu0 %v1098
        %1170 = vmatprep.mubr.bf16.mxu0 %v971
        %1171 = vmatmul.mubr.bf16.gmra.mxu0 %v970
        %v1172 = vpop.f32.mrf.mxu0
        %v1173 = vadd.f32 0.0, %v1172
        %v1174 = vpop.f32.mrf.mxu0
        %v1175 = vpop.f32.mrf.mxu0
        %v1176 = vadd.f32 0.0, %v1175
        %v1177 = vpop.f32.mrf.mxu0
        %1178 = vmatprep.mubr.bf16.mxu0 %v974
        %1179 = vmatmul.mubr.bf16.gmra.mxu0 %v973
        %v1180 = vpop.f32.mrf.mxu0
        %v1181 = vadd.f32 0.0, %v1180
        %v1182 = vpop.f32.mrf.mxu0
        %v1183 = vpop.f32.mrf.mxu0
        %v1184 = vadd.f32 0.0, %v1183
        %v1185 = vpop.f32.mrf.mxu0
        %1186 = vmatprep.mubr.bf16.mxu0 %v977
        %1187 = vmatmul.mubr.bf16.gmra.mxu0 %v976
        %v1188 = vpop.f32.mrf.mxu0
        %v1189 = vadd.f32 0.0, %v1188
        %v1190 = vpop.f32.mrf.mxu0
        %v1191 = vpop.f32.mrf.mxu0
        %v1192 = vadd.f32 0.0, %v1191
        %v1193 = vpop.f32.mrf.mxu0
        %1194 = vmatprep.mubr.bf16.mxu0 %v980
        %1195 = vmatmul.mubr.bf16.gmra.mxu0 %v979
        %v1196 = vpop.f32.mrf.mxu0
        %v1197 = vadd.f32 0.0, %v1196
        %v1198 = vpop.f32.mrf.mxu0
        %v1199 = vpop.f32.mrf.mxu0
        %v1200 = vadd.f32 0.0, %v1199
        %v1201 = vpop.f32.mrf.mxu0
        %1202 = vdwg.mxu0
        %1203 = vmatprep.subr.bf16.mxu0 0
        %1204 = vmatpush1.bf16.msra.mxu0 %v1113
        %1205 = vmatprep.subr.bf16.mxu0 0
        %1206 = vmatpush1.bf16.msra.mxu0 %v1112
        %1207 = vmatprep.subr.bf16.mxu0 0
        %1208 = vmatpush1.bf16.msra.mxu0 %v1111
        %1209 = vmatprep.subr.bf16.mxu0 0
        %1210 = vmatpush1.bf16.msra.mxu0 %v1110
        %1211 = vmatprep.subr.bf16.mxu0 0
        %1212 = vmatpush1.bf16.msra.mxu0 %v1109
        %1213 = vmatprep.subr.bf16.mxu0 0
        %1214 = vmatpush1.bf16.msra.mxu0 %v1108
        %1215 = vmatprep.subr.bf16.mxu0 0
        %1216 = vmatpush1.bf16.msra.mxu0 %v1107
        %1217 = vmatprep.subr.bf16.mxu0 0
        %1218 = vmatpush1.bf16.msra.mxu0 %v1106
        %1219 = vmatprep.subr.bf16.mxu0 0
        %1220 = vmatpush2.bf16.msra.mxu0 0
        %1221 = vmatprep.subr.bf16.mxu0 0
        %1222 = vmatpush2.bf16.msra.mxu0 0
        %1223 = vmatprep.subr.bf16.mxu0 0
        %1224 = vmatpush2.bf16.msra.mxu0 0
        %1225 = vmatprep.subr.bf16.mxu0 0
        %1226 = vmatpush2.bf16.msra.mxu0 0
        %1227 = vmatprep.subr.bf16.mxu0 0
        %1228 = vmatpush2.bf16.msra.mxu0 0
        %1229 = vmatprep.subr.bf16.mxu0 0
        %1230 = vmatpush2.bf16.msra.mxu0 0
        %1231 = vmatprep.subr.bf16.mxu0 0
        %1232 = vmatpush2.bf16.msra.mxu0 0
        %1233 = vmatprep.subr.bf16.mxu0 0
        %1234 = vmatpush2.bf16.msra.mxu0 0
        %1235 = vmatprep.mubr.bf16.mxu0 0
        %1236 = vmatmul.mubr.bf16.gmra.mxu0 %v972
        %v1237 = vpop.f32.mrf.mxu0
        %v1238 = vadd.f32 %v1173, %v1237
        %v1239 = vpop.f32.mrf.mxu0
        %v1240 = vpop.f32.mrf.mxu0
        %v1241 = vadd.f32 %v1176, %v1240
        %v1242 = vpop.f32.mrf.mxu0
        %1243 = vmatprep.mubr.bf16.mxu0 0
        %1244 = vmatmul.mubr.bf16.gmra.mxu0 %v975
        %v1245 = vpop.f32.mrf.mxu0
        %v1246 = vadd.f32 %v1181, %v1245
        %v1247 = vpop.f32.mrf.mxu0
        %v1248 = vpop.f32.mrf.mxu0
        %v1249 = vadd.f32 %v1184, %v1248
        %v1250 = vpop.f32.mrf.mxu0
        %1251 = vmatprep.mubr.bf16.mxu0 0
        %1252 = vmatmul.mubr.bf16.gmra.mxu0 %v978
        %v1253 = vpop.f32.mrf.mxu0
        %v1254 = vadd.f32 %v1189, %v1253
        %v1255 = vpop.f32.mrf.mxu0
        %v1256 = vpop.f32.mrf.mxu0
        %v1257 = vadd.f32 %v1192, %v1256
        %v1258 = vpop.f32.mrf.mxu0
        %1259 = vmatprep.mubr.bf16.mxu0 0
        %1260 = vmatmul.mubr.bf16.gmra.mxu0 %v981
        %v1261 = vpop.f32.mrf.mxu0
        %v1262 = vadd.f32 %v1197, %v1261
        %v1263 = vpop.f32.mrf.mxu0
        %v1264 = vpop.f32.mrf.mxu0
        %v1265 = vadd.f32 %v1200, %v1264
        %v1266 = vpop.f32.mrf.mxu0
        %1267 = vdwg.mxu0
        %v1284 = vunpack.c.l.b16 %v801
        %v1285 = vunpack.c.h.b16 %v801
        %v1286 = vunpack.c.l.b16 %v802
        %v1287 = vunpack.c.l.b16 %v803
        %v1288 = vunpack.c.h.b16 %v803
        %v1289 = vunpack.c.l.b16 %v804
        %v1290 = vunpack.c.l.b16 %v805
        %v1291 = vunpack.c.h.b16 %v805
        %v1292 = vunpack.c.l.b16 %v806
        %v1293 = vunpack.c.l.b16 %v807
        %v1294 = vunpack.c.h.b16 %v807
        %v1295 = vunpack.c.l.b16 %v808
        %v1296 = vunpack.c.l.b16 %v809
        %v1297 = vunpack.c.h.b16 %v809
        %v1298 = vunpack.c.l.b16 %v810
        %v1299 = vunpack.c.l.b16 %v811
        %v1300 = vunpack.c.h.b16 %v811
        %v1301 = vunpack.c.l.b16 %v812
        %v1302 = vunpack.c.l.b16 %v813
        %v1303 = vunpack.c.h.b16 %v813
        %v1304 = vunpack.c.l.b16 %v814
        %v1305 = vunpack.c.l.b16 %v815
        %v1306 = vunpack.c.h.b16 %v815
        %v1307 = vunpack.c.l.b16 %v816
        %v1308 = vpack.c.b16 %v1287, %v1284
        %v1309 = vpack.c.b16 %v1288, %v1285
        %v1310 = vpack.c.b16 %v1289, %v1286
        %v1311 = vpack.c.b16 %v1293, %v1290
        %v1312 = vpack.c.b16 %v1294, %v1291
        %v1313 = vpack.c.b16 %v1295, %v1292
        %v1314 = vpack.c.b16 %v1299, %v1296
        %v1315 = vpack.c.b16 %v1300, %v1297
        %v1316 = vpack.c.b16 %v1301, %v1298
        %v1317 = vpack.c.b16 %v1305, %v1302
        %v1318 = vpack.c.b16 %v1306, %v1303
        %v1319 = vpack.c.b16 %v1307, %v1304
        %v1380 = vunpack.c.l.b16 %v817
        %v1381 = vunpack.c.l.b16 %v818
        %v1382 = vunpack.c.l.b16 %v819
        %v1383 = vunpack.c.l.b16 %v820
        %v1384 = vunpack.c.l.b16 %v821
        %v1385 = vunpack.c.l.b16 %v822
        %v1386 = vunpack.c.l.b16 %v823
        %v1387 = vunpack.c.l.b16 %v824
        %v1388 = vunpack.c.l.b16 %v825
        %v1389 = vunpack.c.l.b16 %v826
        %v1390 = vunpack.c.l.b16 %v827
        %v1391 = vunpack.c.l.b16 %v828
        %v1392 = vunpack.c.l.b16 %v829
        %v1393 = vunpack.c.l.b16 %v830
        %v1394 = vunpack.c.l.b16 %v831
        %v1395 = vunpack.c.l.b16 %v832
        %v1396 = vunpack.c.l.b16 %v833
        %v1397 = vunpack.c.l.b16 %v834
        %v1398 = vunpack.c.l.b16 %v835
        %v1399 = vunpack.c.l.b16 %v836
        %v1400 = vunpack.c.l.b16 %v837
        %v1401 = vunpack.c.l.b16 %v838
        %v1402 = vunpack.c.l.b16 %v839
        %v1403 = vunpack.c.l.b16 %v840
        %v1404 = vunpack.c.l.b16 %v841
        %v1405 = vunpack.c.l.b16 %v842
        %v1406 = vunpack.c.l.b16 %v843
        %v1407 = vunpack.c.l.b16 %v844
        %v1408 = vunpack.c.l.b16 %v845
        %v1409 = vunpack.c.l.b16 %v846
        %v1410 = vunpack.c.l.b16 %v847
        %v1411 = vunpack.c.l.b16 %v848
        %v1412 = vunpack.c.l.b16 %v849
        %v1413 = vunpack.c.l.b16 %v850
        %v1414 = vunpack.c.l.b16 %v851
        %v1415 = vunpack.c.l.b16 %v852
        %v1416 = vunpack.c.l.b16 %v853
        %v1417 = vunpack.c.l.b16 %v854
        %v1418 = vunpack.c.l.b16 %v855
        %v1419 = vunpack.c.l.b16 %v856
        %v1420 = vunpack.c.l.b16 %v857
        %v1421 = vunpack.c.l.b16 %v858
        %v1422 = vunpack.c.l.b16 %v859
        %v1423 = vunpack.c.l.b16 %v860
        %v1424 = vunpack.c.l.b16 %v861
        %v1425 = vunpack.c.l.b16 %v862
        %v1426 = vunpack.c.l.b16 %v863
        %v1427 = vunpack.c.l.b16 %v864
        %v1428 = vpack.c.b16 %v1381, %v1380
        %v1429 = vpack.c.b16 %v1383, %v1382
        %v1430 = vpack.c.b16 %v1385, %v1384
        %v1431 = vpack.c.b16 %v1387, %v1386
        %v1432 = vpack.c.b16 %v1389, %v1388
        %v1433 = vpack.c.b16 %v1391, %v1390
        %v1434 = vpack.c.b16 %v1393, %v1392
        %v1435 = vpack.c.b16 %v1395, %v1394
        %v1436 = vpack.c.b16 %v1397, %v1396
        %v1437 = vpack.c.b16 %v1399, %v1398
        %v1438 = vpack.c.b16 %v1401, %v1400
        %v1439 = vpack.c.b16 %v1403, %v1402
        %v1440 = vpack.c.b16 %v1405, %v1404
        %v1441 = vpack.c.b16 %v1407, %v1406
        %v1442 = vpack.c.b16 %v1409, %v1408
        %v1443 = vpack.c.b16 %v1411, %v1410
        %v1444 = vpack.c.b16 %v1413, %v1412
        %v1445 = vpack.c.b16 %v1415, %v1414
        %v1446 = vpack.c.b16 %v1417, %v1416
        %v1447 = vpack.c.b16 %v1419, %v1418
        %v1448 = vpack.c.b16 %v1421, %v1420
        %v1449 = vpack.c.b16 %v1423, %v1422
        %v1450 = vpack.c.b16 %v1425, %v1424
        %v1451 = vpack.c.b16 %v1427, %v1426
        %1476 = vmatprep.subr.bf16.mxu0 0
        %1477 = vmatpush1.bf16.msra.mxu0 %v1435
        %1478 = vmatprep.subr.bf16.mxu0 0
        %1479 = vmatpush1.bf16.msra.mxu0 %v1434
        %1480 = vmatprep.subr.bf16.mxu0 0
        %1481 = vmatpush1.bf16.msra.mxu0 %v1433
        %1482 = vmatprep.subr.bf16.mxu0 0
        %1483 = vmatpush1.bf16.msra.mxu0 %v1432
        %1484 = vmatprep.subr.bf16.mxu0 0
        %1485 = vmatpush1.bf16.msra.mxu0 %v1431
        %1486 = vmatprep.subr.bf16.mxu0 0
        %1487 = vmatpush1.bf16.msra.mxu0 %v1430
        %1488 = vmatprep.subr.bf16.mxu0 0
        %1489 = vmatpush1.bf16.msra.mxu0 %v1429
        %1490 = vmatprep.subr.bf16.mxu0 0
        %1491 = vmatpush1.bf16.msra.mxu0 %v1428
        %1492 = vmatprep.subr.bf16.mxu0 0
        %1493 = vmatpush2.bf16.msra.mxu0 %v1443
        %1494 = vmatprep.subr.bf16.mxu0 0
        %1495 = vmatpush2.bf16.msra.mxu0 %v1442
        %1496 = vmatprep.subr.bf16.mxu0 0
        %1497 = vmatpush2.bf16.msra.mxu0 %v1441
        %1498 = vmatprep.subr.bf16.mxu0 0
        %1499 = vmatpush2.bf16.msra.mxu0 %v1440
        %1500 = vmatprep.subr.bf16.mxu0 0
        %1501 = vmatpush2.bf16.msra.mxu0 %v1439
        %1502 = vmatprep.subr.bf16.mxu0 0
        %1503 = vmatpush2.bf16.msra.mxu0 %v1438
        %1504 = vmatprep.subr.bf16.mxu0 0
        %1505 = vmatpush2.bf16.msra.mxu0 %v1437
        %1506 = vmatprep.subr.bf16.mxu0 0
        %1507 = vmatpush2.bf16.msra.mxu0 %v1436
        %1508 = vmatprep.mubr.bf16.mxu0 %v1309
        %1509 = vmatmul.mubr.bf16.gmra.mxu0 %v1308
        %v1510 = vpop.f32.mrf.mxu0
        %v1511 = vadd.f32 %v1238, %v1510
        %v1512 = vpop.f32.mrf.mxu0
        %v1513 = vpop.f32.mrf.mxu0
        %v1514 = vadd.f32 %v1241, %v1513
        %v1515 = vpop.f32.mrf.mxu0
        %1516 = vmatprep.mubr.bf16.mxu0 %v1312
        %1517 = vmatmul.mubr.bf16.gmra.mxu0 %v1311
        %v1518 = vpop.f32.mrf.mxu0
        %v1519 = vadd.f32 %v1246, %v1518
        %v1520 = vpop.f32.mrf.mxu0
        %v1521 = vpop.f32.mrf.mxu0
        %v1522 = vadd.f32 %v1249, %v1521
        %v1523 = vpop.f32.mrf.mxu0
        %1524 = vmatprep.mubr.bf16.mxu0 %v1315
        %1525 = vmatmul.mubr.bf16.gmra.mxu0 %v1314
        %v1526 = vpop.f32.mrf.mxu0
        %v1527 = vadd.f32 %v1254, %v1526
        %v1528 = vpop.f32.mrf.mxu0
        %v1529 = vpop.f32.mrf.mxu0
        %v1530 = vadd.f32 %v1257, %v1529
        %v1531 = vpop.f32.mrf.mxu0
        %1532 = vmatprep.mubr.bf16.mxu0 %v1318
        %1533 = vmatmul.mubr.bf16.gmra.mxu0 %v1317
        %v1534 = vpop.f32.mrf.mxu0
        %v1535 = vadd.f32 %v1262, %v1534
        %v1536 = vpop.f32.mrf.mxu0
        %v1537 = vpop.f32.mrf.mxu0
        %v1538 = vadd.f32 %v1265, %v1537
        %v1539 = vpop.f32.mrf.mxu0
        %1540 = vdwg.mxu0
        %1541 = vmatprep.subr.bf16.mxu0 0
        %1542 = vmatpush1.bf16.msra.mxu0 %v1451
        %1543 = vmatprep.subr.bf16.mxu0 0
        %1544 = vmatpush1.bf16.msra.mxu0 %v1450
        %1545 = vmatprep.subr.bf16.mxu0 0
        %1546 = vmatpush1.bf16.msra.mxu0 %v1449
        %1547 = vmatprep.subr.bf16.mxu0 0
        %1548 = vmatpush1.bf16.msra.mxu0 %v1448
        %1549 = vmatprep.subr.bf16.mxu0 0
        %1550 = vmatpush1.bf16.msra.mxu0 %v1447
        %1551 = vmatprep.subr.bf16.mxu0 0
        %1552 = vmatpush1.bf16.msra.mxu0 %v1446
        %1553 = vmatprep.subr.bf16.mxu0 0
        %1554 = vmatpush1.bf16.msra.mxu0 %v1445
        %1555 = vmatprep.subr.bf16.mxu0 0
        %1556 = vmatpush1.bf16.msra.mxu0 %v1444
        %1557 = vmatprep.subr.bf16.mxu0 0
        %1558 = vmatpush2.bf16.msra.mxu0 0
        %1559 = vmatprep.subr.bf16.mxu0 0
        %1560 = vmatpush2.bf16.msra.mxu0 0
        %1561 = vmatprep.subr.bf16.mxu0 0
        %1562 = vmatpush2.bf16.msra.mxu0 0
        %1563 = vmatprep.subr.bf16.mxu0 0
        %1564 = vmatpush2.bf16.msra.mxu0 0
        %1565 = vmatprep.subr.bf16.mxu0 0
        %1566 = vmatpush2.bf16.msra.mxu0 0
        %1567 = vmatprep.subr.bf16.mxu0 0
        %1568 = vmatpush2.bf16.msra.mxu0 0
        %1569 = vmatprep.subr.bf16.mxu0 0
        %1570 = vmatpush2.bf16.msra.mxu0 0
        %1571 = vmatprep.subr.bf16.mxu0 0
        %1572 = vmatpush2.bf16.msra.mxu0 0
        %1573 = vmatprep.mubr.bf16.mxu0 0
        %1574 = vmatmul.mubr.bf16.gmra.mxu0 %v1310
        %v1575 = vpop.f32.mrf.mxu0
        %v1576 = vadd.f32 %v1511, %v1575
        %v1577 = vpop.f32.mrf.mxu0
        %v1578 = vpop.f32.mrf.mxu0
        %v1579 = vadd.f32 %v1514, %v1578
        %v1580 = vpop.f32.mrf.mxu0
        %1581 = vmatprep.mubr.bf16.mxu0 0
        %1582 = vmatmul.mubr.bf16.gmra.mxu0 %v1313
        %v1583 = vpop.f32.mrf.mxu0
        %v1584 = vadd.f32 %v1519, %v1583
        %v1585 = vpop.f32.mrf.mxu0
        %v1586 = vpop.f32.mrf.mxu0
        %v1587 = vadd.f32 %v1522, %v1586
        %v1588 = vpop.f32.mrf.mxu0
        %1589 = vmatprep.mubr.bf16.mxu0 0
        %1590 = vmatmul.mubr.bf16.gmra.mxu0 %v1316
        %v1591 = vpop.f32.mrf.mxu0
        %v1592 = vadd.f32 %v1527, %v1591
        %v1593 = vpop.f32.mrf.mxu0
        %v1594 = vpop.f32.mrf.mxu0
        %v1595 = vadd.f32 %v1530, %v1594
        %v1596 = vpop.f32.mrf.mxu0
        %1597 = vmatprep.mubr.bf16.mxu0 0
        %1598 = vmatmul.mubr.bf16.gmra.mxu0 %v1319
        %v1599 = vpop.f32.mrf.mxu0
        %v1600 = vadd.f32 %v1535, %v1599
        %v1601 = vpop.f32.mrf.mxu0
        %v1602 = vpop.f32.mrf.mxu0
        %v1603 = vadd.f32 %v1538, %v1602
        %v1604 = vpop.f32.mrf.mxu0
        %1605 = vdwg.mxu0
        %s1606 = scalar_lea.vmem [#allocation2], 24
        %v1607 = vld [vmem:[%s1606] sm:$0xff]
        %v1608 = vld [vmem:[%s1606 + $0x8] sm:$0xf]
        %v1609 = vld [vmem:[%s1606 + $0xc] sm:$0xff]
        %v1610 = vld [vmem:[%s1606 + $0x14] sm:$0xf]
        %v1611 = vld [vmem:[%s1606 + $0x18] sm:$0xff]
        %v1612 = vld [vmem:[%s1606 + $0x20] sm:$0xf]
        %v1613 = vld [vmem:[%s1606 + $0x24] sm:$0xff]
        %v1614 = vld [vmem:[%s1606 + $0x2c] sm:$0xf]
        %v1615 = vld [vmem:[%s1606 + $0x30] sm:$0xff]
        %v1616 = vld [vmem:[%s1606 + $0x38] sm:$0xf]
        %v1617 = vld [vmem:[%s1606 + $0x3c] sm:$0xff]
        %v1618 = vld [vmem:[%s1606 + $0x44] sm:$0xf]
        %v1619 = vld [vmem:[%s1606 + $0x48] sm:$0xff]
        %v1620 = vld [vmem:[%s1606 + $0x50] sm:$0xf]
        %v1621 = vld [vmem:[%s1606 + $0x54] sm:$0xff]
        %v1622 = vld [vmem:[%s1606 + $0x5c] sm:$0xf]
        %s1623 = scalar_lea.vmem [#allocation8], 384
        %v1624 = vld [vmem:[%s1623] sm:$0xf]
        %v1625 = vld [vmem:[%s1623 + $0x4] sm:$0xf]
        %v1626 = vld [vmem:[%s1623 + $0x8] sm:$0xf]
        %v1627 = vld [vmem:[%s1623 + $0xc] sm:$0xf]
        %v1628 = vld [vmem:[%s1623 + $0x10] sm:$0xf]
        %v1629 = vld [vmem:[%s1623 + $0x14] sm:$0xf]
        %v1630 = vld [vmem:[%s1623 + $0x18] sm:$0xf]
        %v1631 = vld [vmem:[%s1623 + $0x1c] sm:$0xf]
        %v1632 = vld [vmem:[%s1623 + $0x20] sm:$0xf]
        %v1633 = vld [vmem:[%s1623 + $0x24] sm:$0xf]
        %v1634 = vld [vmem:[%s1623 + $0x28] sm:$0xf]
        %v1635 = vld [vmem:[%s1623 + $0x2c] sm:$0xf]
        %v1636 = vld [vmem:[%s1623 + $0x30] sm:$0xf]
        %v1637 = vld [vmem:[%s1623 + $0x34] sm:$0xf]
        %v1638 = vld [vmem:[%s1623 + $0x38] sm:$0xf]
        %v1639 = vld [vmem:[%s1623 + $0x3c] sm:$0xf]
        %v1640 = vld [vmem:[%s1623 + $0x40] sm:$0xf]
        %v1641 = vld [vmem:[%s1623 + $0x44] sm:$0xf]
        %v1642 = vld [vmem:[%s1623 + $0x48] sm:$0xf]
        %v1643 = vld [vmem:[%s1623 + $0x4c] sm:$0xf]
        %v1644 = vld [vmem:[%s1623 + $0x50] sm:$0xf]
        %v1645 = vld [vmem:[%s1623 + $0x54] sm:$0xf]
        %v1646 = vld [vmem:[%s1623 + $0x58] sm:$0xf]
        %v1647 = vld [vmem:[%s1623 + $0x5c] sm:$0xf]
        %v1648 = vld [vmem:[%s1623 + $0x60] sm:$0xf]
        %v1649 = vld [vmem:[%s1623 + $0x64] sm:$0xf]
        %v1650 = vld [vmem:[%s1623 + $0x68] sm:$0xf]
        %v1651 = vld [vmem:[%s1623 + $0x6c] sm:$0xf]
        %v1652 = vld [vmem:[%s1623 + $0x70] sm:$0xf]
        %v1653 = vld [vmem:[%s1623 + $0x74] sm:$0xf]
        %v1654 = vld [vmem:[%s1623 + $0x78] sm:$0xf]
        %v1655 = vld [vmem:[%s1623 + $0x7c] sm:$0xf]
        %v1656 = vld [vmem:[%s1623 + $0x80] sm:$0xf]
        %v1657 = vld [vmem:[%s1623 + $0x84] sm:$0xf]
        %v1658 = vld [vmem:[%s1623 + $0x88] sm:$0xf]
        %v1659 = vld [vmem:[%s1623 + $0x8c] sm:$0xf]
        %v1660 = vld [vmem:[%s1623 + $0x90] sm:$0xf]
        %v1661 = vld [vmem:[%s1623 + $0x94] sm:$0xf]
        %v1662 = vld [vmem:[%s1623 + $0x98] sm:$0xf]
        %v1663 = vld [vmem:[%s1623 + $0x9c] sm:$0xf]
        %v1664 = vld [vmem:[%s1623 + $0xa0] sm:$0xf]
        %v1665 = vld [vmem:[%s1623 + $0xa4] sm:$0xf]
        %v1666 = vld [vmem:[%s1623 + $0xa8] sm:$0xf]
        %v1667 = vld [vmem:[%s1623 + $0xac] sm:$0xf]
        %v1668 = vld [vmem:[%s1623 + $0xb0] sm:$0xf]
        %v1669 = vld [vmem:[%s1623 + $0xb4] sm:$0xf]
        %v1670 = vld [vmem:[%s1623 + $0xb8] sm:$0xf]
        %v1671 = vld [vmem:[%s1623 + $0xbc] sm:$0xf]
        %v1688 = vunpack.c.l.b16 %v1607
        %v1689 = vunpack.c.h.b16 %v1607
        %v1690 = vunpack.c.l.b16 %v1608
        %v1691 = vunpack.c.l.b16 %v1609
        %v1692 = vunpack.c.h.b16 %v1609
        %v1693 = vunpack.c.l.b16 %v1610
        %v1694 = vunpack.c.l.b16 %v1611
        %v1695 = vunpack.c.h.b16 %v1611
        %v1696 = vunpack.c.l.b16 %v1612
        %v1697 = vunpack.c.l.b16 %v1613
        %v1698 = vunpack.c.h.b16 %v1613
        %v1699 = vunpack.c.l.b16 %v1614
        %v1700 = vunpack.c.l.b16 %v1615
        %v1701 = vunpack.c.h.b16 %v1615
        %v1702 = vunpack.c.l.b16 %v1616
        %v1703 = vunpack.c.l.b16 %v1617
        %v1704 = vunpack.c.h.b16 %v1617
        %v1705 = vunpack.c.l.b16 %v1618
        %v1706 = vunpack.c.l.b16 %v1619
        %v1707 = vunpack.c.h.b16 %v1619
        %v1708 = vunpack.c.l.b16 %v1620
        %v1709 = vunpack.c.l.b16 %v1621
        %v1710 = vunpack.c.h.b16 %v1621
        %v1711 = vunpack.c.l.b16 %v1622
        %v1712 = vpack.c.b16 %v1691, %v1688
        %v1713 = vpack.c.b16 %v1692, %v1689
        %v1714 = vpack.c.b16 %v1693, %v1690
        %v1715 = vpack.c.b16 %v1697, %v1694
        %v1716 = vpack.c.b16 %v1698, %v1695
        %v1717 = vpack.c.b16 %v1699, %v1696
        %v1718 = vpack.c.b16 %v1703, %v1700
        %v1719 = vpack.c.b16 %v1704, %v1701
        %v1720 = vpack.c.b16 %v1705, %v1702
        %v1721 = vpack.c.b16 %v1709, %v1706
        %v1722 = vpack.c.b16 %v1710, %v1707
        %v1723 = vpack.c.b16 %v1711, %v1708
        %v1784 = vunpack.c.l.b16 %v1624
        %v1785 = vunpack.c.l.b16 %v1625
        %v1786 = vunpack.c.l.b16 %v1626
        %v1787 = vunpack.c.l.b16 %v1627
        %v1788 = vunpack.c.l.b16 %v1628
        %v1789 = vunpack.c.l.b16 %v1629
        %v1790 = vunpack.c.l.b16 %v1630
        %v1791 = vunpack.c.l.b16 %v1631
        %v1792 = vunpack.c.l.b16 %v1632
        %v1793 = vunpack.c.l.b16 %v1633
        %v1794 = vunpack.c.l.b16 %v1634
        %v1795 = vunpack.c.l.b16 %v1635
        %v1796 = vunpack.c.l.b16 %v1636
        %v1797 = vunpack.c.l.b16 %v1637
        %v1798 = vunpack.c.l.b16 %v1638
        %v1799 = vunpack.c.l.b16 %v1639
        %v1800 = vunpack.c.l.b16 %v1640
        %v1801 = vunpack.c.l.b16 %v1641
        %v1802 = vunpack.c.l.b16 %v1642
        %v1803 = vunpack.c.l.b16 %v1643
        %v1804 = vunpack.c.l.b16 %v1644
        %v1805 = vunpack.c.l.b16 %v1645
        %v1806 = vunpack.c.l.b16 %v1646
        %v1807 = vunpack.c.l.b16 %v1647
        %v1808 = vunpack.c.l.b16 %v1648
        %v1809 = vunpack.c.l.b16 %v1649
        %v1810 = vunpack.c.l.b16 %v1650
        %v1811 = vunpack.c.l.b16 %v1651
        %v1812 = vunpack.c.l.b16 %v1652
        %v1813 = vunpack.c.l.b16 %v1653
        %v1814 = vunpack.c.l.b16 %v1654
        %v1815 = vunpack.c.l.b16 %v1655
        %v1816 = vunpack.c.l.b16 %v1656
        %v1817 = vunpack.c.l.b16 %v1657
        %v1818 = vunpack.c.l.b16 %v1658
        %v1819 = vunpack.c.l.b16 %v1659
        %v1820 = vunpack.c.l.b16 %v1660
        %v1821 = vunpack.c.l.b16 %v1661
        %v1822 = vunpack.c.l.b16 %v1662
        %v1823 = vunpack.c.l.b16 %v1663
        %v1824 = vunpack.c.l.b16 %v1664
        %v1825 = vunpack.c.l.b16 %v1665
        %v1826 = vunpack.c.l.b16 %v1666
        %v1827 = vunpack.c.l.b16 %v1667
        %v1828 = vunpack.c.l.b16 %v1668
        %v1829 = vunpack.c.l.b16 %v1669
        %v1830 = vunpack.c.l.b16 %v1670
        %v1831 = vunpack.c.l.b16 %v1671
        %v1832 = vpack.c.b16 %v1785, %v1784
        %v1833 = vpack.c.b16 %v1787, %v1786
        %v1834 = vpack.c.b16 %v1789, %v1788
        %v1835 = vpack.c.b16 %v1791, %v1790
        %v1836 = vpack.c.b16 %v1793, %v1792
        %v1837 = vpack.c.b16 %v1795, %v1794
        %v1838 = vpack.c.b16 %v1797, %v1796
        %v1839 = vpack.c.b16 %v1799, %v1798
        %v1840 = vpack.c.b16 %v1801, %v1800
        %v1841 = vpack.c.b16 %v1803, %v1802
        %v1842 = vpack.c.b16 %v1805, %v1804
        %v1843 = vpack.c.b16 %v1807, %v1806
        %v1844 = vpack.c.b16 %v1809, %v1808
        %v1845 = vpack.c.b16 %v1811, %v1810
        %v1846 = vpack.c.b16 %v1813, %v1812
        %v1847 = vpack.c.b16 %v1815, %v1814
        %v1848 = vpack.c.b16 %v1817, %v1816
        %v1849 = vpack.c.b16 %v1819, %v1818
        %v1850 = vpack.c.b16 %v1821, %v1820
        %v1851 = vpack.c.b16 %v1823, %v1822
        %v1852 = vpack.c.b16 %v1825, %v1824
        %v1853 = vpack.c.b16 %v1827, %v1826
        %v1854 = vpack.c.b16 %v1829, %v1828
        %v1855 = vpack.c.b16 %v1831, %v1830
        %1880 = vmatprep.subr.bf16.mxu0 0
        %1881 = vmatpush1.bf16.msra.mxu0 %v1839
        %1882 = vmatprep.subr.bf16.mxu0 0
        %1883 = vmatpush1.bf16.msra.mxu0 %v1838
        %1884 = vmatprep.subr.bf16.mxu0 0
        %1885 = vmatpush1.bf16.msra.mxu0 %v1837
        %1886 = vmatprep.subr.bf16.mxu0 0
        %1887 = vmatpush1.bf16.msra.mxu0 %v1836
        %1888 = vmatprep.subr.bf16.mxu0 0
        %1889 = vmatpush1.bf16.msra.mxu0 %v1835
        %1890 = vmatprep.subr.bf16.mxu0 0
        %1891 = vmatpush1.bf16.msra.mxu0 %v1834
        %1892 = vmatprep.subr.bf16.mxu0 0
        %1893 = vmatpush1.bf16.msra.mxu0 %v1833
        %1894 = vmatprep.subr.bf16.mxu0 0
        %1895 = vmatpush1.bf16.msra.mxu0 %v1832
        %1896 = vmatprep.subr.bf16.mxu0 0
        %1897 = vmatpush2.bf16.msra.mxu0 %v1847
        %1898 = vmatprep.subr.bf16.mxu0 0
        %1899 = vmatpush2.bf16.msra.mxu0 %v1846
        %1900 = vmatprep.subr.bf16.mxu0 0
        %1901 = vmatpush2.bf16.msra.mxu0 %v1845
        %1902 = vmatprep.subr.bf16.mxu0 0
        %1903 = vmatpush2.bf16.msra.mxu0 %v1844
        %1904 = vmatprep.subr.bf16.mxu0 0
        %1905 = vmatpush2.bf16.msra.mxu0 %v1843
        %1906 = vmatprep.subr.bf16.mxu0 0
        %1907 = vmatpush2.bf16.msra.mxu0 %v1842
        %1908 = vmatprep.subr.bf16.mxu0 0
        %1909 = vmatpush2.bf16.msra.mxu0 %v1841
        %1910 = vmatprep.subr.bf16.mxu0 0
        %1911 = vmatpush2.bf16.msra.mxu0 %v1840
        %1912 = vmatprep.mubr.bf16.mxu0 %v1713
        %1913 = vmatmul.mubr.bf16.gmra.mxu0 %v1712
        %v1914 = vpop.f32.mrf.mxu0
        %v1915 = vadd.f32 0.0, %v1914
        %v1916 = vpop.f32.mrf.mxu0
        %v1917 = vpop.f32.mrf.mxu0
        %v1918 = vadd.f32 0.0, %v1917
        %v1919 = vpop.f32.mrf.mxu0
        %1920 = vmatprep.mubr.bf16.mxu0 %v1716
        %1921 = vmatmul.mubr.bf16.gmra.mxu0 %v1715
        %v1922 = vpop.f32.mrf.mxu0
        %v1923 = vadd.f32 0.0, %v1922
        %v1924 = vpop.f32.mrf.mxu0
        %v1925 = vpop.f32.mrf.mxu0
        %v1926 = vadd.f32 0.0, %v1925
        %v1927 = vpop.f32.mrf.mxu0
        %1928 = vmatprep.mubr.bf16.mxu0 %v1719
        %1929 = vmatmul.mubr.bf16.gmra.mxu0 %v1718
        %v1930 = vpop.f32.mrf.mxu0
        %v1931 = vadd.f32 0.0, %v1930
        %v1932 = vpop.f32.mrf.mxu0
        %v1933 = vpop.f32.mrf.mxu0
        %v1934 = vadd.f32 0.0, %v1933
        %v1935 = vpop.f32.mrf.mxu0
        %1936 = vmatprep.mubr.bf16.mxu0 %v1722
        %1937 = vmatmul.mubr.bf16.gmra.mxu0 %v1721
        %v1938 = vpop.f32.mrf.mxu0
        %v1939 = vadd.f32 0.0, %v1938
        %v1940 = vpop.f32.mrf.mxu0
        %v1941 = vpop.f32.mrf.mxu0
        %v1942 = vadd.f32 0.0, %v1941
        %v1943 = vpop.f32.mrf.mxu0
        %1944 = vdwg.mxu0
        %1945 = vmatprep.subr.bf16.mxu0 0
        %1946 = vmatpush1.bf16.msra.mxu0 %v1855
        %1947 = vmatprep.subr.bf16.mxu0 0
        %1948 = vmatpush1.bf16.msra.mxu0 %v1854
        %1949 = vmatprep.subr.bf16.mxu0 0
        %1950 = vmatpush1.bf16.msra.mxu0 %v1853
        %1951 = vmatprep.subr.bf16.mxu0 0
        %1952 = vmatpush1.bf16.msra.mxu0 %v1852
        %1953 = vmatprep.subr.bf16.mxu0 0
        %1954 = vmatpush1.bf16.msra.mxu0 %v1851
        %1955 = vmatprep.subr.bf16.mxu0 0
        %1956 = vmatpush1.bf16.msra.mxu0 %v1850
        %1957 = vmatprep.subr.bf16.mxu0 0
        %1958 = vmatpush1.bf16.msra.mxu0 %v1849
        %1959 = vmatprep.subr.bf16.mxu0 0
        %1960 = vmatpush1.bf16.msra.mxu0 %v1848
        %1961 = vmatprep.subr.bf16.mxu0 0
        %1962 = vmatpush2.bf16.msra.mxu0 0
        %1963 = vmatprep.subr.bf16.mxu0 0
        %1964 = vmatpush2.bf16.msra.mxu0 0
        %1965 = vmatprep.subr.bf16.mxu0 0
        %1966 = vmatpush2.bf16.msra.mxu0 0
        %1967 = vmatprep.subr.bf16.mxu0 0
        %1968 = vmatpush2.bf16.msra.mxu0 0
        %1969 = vmatprep.subr.bf16.mxu0 0
        %1970 = vmatpush2.bf16.msra.mxu0 0
        %1971 = vmatprep.subr.bf16.mxu0 0
        %1972 = vmatpush2.bf16.msra.mxu0 0
        %1973 = vmatprep.subr.bf16.mxu0 0
        %1974 = vmatpush2.bf16.msra.mxu0 0
        %1975 = vmatprep.subr.bf16.mxu0 0
        %1976 = vmatpush2.bf16.msra.mxu0 0
        %1977 = vmatprep.mubr.bf16.mxu0 0
        %1978 = vmatmul.mubr.bf16.gmra.mxu0 %v1714
        %v1979 = vpop.f32.mrf.mxu0
        %v1980 = vadd.f32 %v1915, %v1979
        %v1981 = vpop.f32.mrf.mxu0
        %v1982 = vpop.f32.mrf.mxu0
        %v1983 = vadd.f32 %v1918, %v1982
        %v1984 = vpop.f32.mrf.mxu0
        %1985 = vmatprep.mubr.bf16.mxu0 0
        %1986 = vmatmul.mubr.bf16.gmra.mxu0 %v1717
        %v1987 = vpop.f32.mrf.mxu0
        %v1988 = vadd.f32 %v1923, %v1987
        %v1989 = vpop.f32.mrf.mxu0
        %v1990 = vpop.f32.mrf.mxu0
        %v1991 = vadd.f32 %v1926, %v1990
        %v1992 = vpop.f32.mrf.mxu0
        %1993 = vmatprep.mubr.bf16.mxu0 0
        %1994 = vmatmul.mubr.bf16.gmra.mxu0 %v1720
        %v1995 = vpop.f32.mrf.mxu0
        %v1996 = vadd.f32 %v1931, %v1995
        %v1997 = vpop.f32.mrf.mxu0
        %v1998 = vpop.f32.mrf.mxu0
        %v1999 = vadd.f32 %v1934, %v1998
        %v2000 = vpop.f32.mrf.mxu0
        %2001 = vmatprep.mubr.bf16.mxu0 0
        %2002 = vmatmul.mubr.bf16.gmra.mxu0 %v1723
        %v2003 = vpop.f32.mrf.mxu0
        %v2004 = vadd.f32 %v1939, %v2003
        %v2005 = vpop.f32.mrf.mxu0
        %v2006 = vpop.f32.mrf.mxu0
        %v2007 = vadd.f32 %v1942, %v2006
        %v2008 = vpop.f32.mrf.mxu0
        %2009 = vdwg.mxu0
        %v2010 = vadd.f32 %v1576, %v1980
        %v2011 = vadd.f32 %v1579, %v1983
        %v2012 = vadd.f32 %v1584, %v1988
        %v2013 = vadd.f32 %v1587, %v1991
        %v2014 = vadd.f32 %v1592, %v1996
        %v2015 = vadd.f32 %v1595, %v1999
        %v2016 = vadd.f32 %v1600, %v2004
        %v2017 = vadd.f32 %v1603, %v2007
        %v2018 = vld [vmem:[%s4] sm:$0x1]
        %v2020 = vlaneseq
        %v2021 = vshrl.u32 %v2020, 7
        %v2022 = vsub.s32 0, %v2021
        %v2023 = vrot.slane %v2018, %v2022
        %v2025 = vadd.f32 %v2010, %v2023
        %v2026 = vadd.f32 %v2011, %v2023
        %v2027 = vadd.f32 %v2012, %v2023
        %v2028 = vadd.f32 %v2013, %v2023
        %v2029 = vadd.f32 %v2014, %v2023
        %v2030 = vadd.f32 %v2015, %v2023
        %v2031 = vadd.f32 %v2016, %v2023
        %v2032 = vadd.f32 %v2017, %v2023
        %v2033 = vmax.f32 %v2025, 0.0
        %v2034 = vmax.f32 %v2026, 0.0
        %v2035 = vmax.f32 %v2027, 0.0
        %v2036 = vmax.f32 %v2028, 0.0
        %v2037 = vmax.f32 %v2029, 0.0
        %v2038 = vmax.f32 %v2030, 0.0
        %v2039 = vmax.f32 %v2031, 0.0
        %v2040 = vmax.f32 %v2032, 0.0
        %v2041 = vpack.c.bf16 %v2034, %v2033
        %v2042 = vpack.c.bf16 %v2036, %v2035
        %v2043 = vpack.c.bf16 %v2038, %v2037
        %v2044 = vpack.c.bf16 %v2040, %v2039
        %v2045 = vld [vmem:[#allocation9] sm:$0xf]
        %v2046 = vld [vmem:[#allocation9 + $0x4] sm:$0xf]
        %v2047 = vld [vmem:[#allocation9 + $0x8] sm:$0xf]
        %v2048 = vld [vmem:[#allocation9 + $0xc] sm:$0xf]
        %v2049 = vld [vmem:[#allocation9 + $0x10] sm:$0xf]
        %v2050 = vld [vmem:[#allocation9 + $0x14] sm:$0xf]
        %v2051 = vld [vmem:[#allocation9 + $0x18] sm:$0xf]
        %v2052 = vld [vmem:[#allocation9 + $0x1c] sm:$0xf]
        %v2053 = vld [vmem:[#allocation9 + $0x20] sm:$0xf]
        %v2054 = vld [vmem:[#allocation9 + $0x24] sm:$0xf]
        %v2055 = vld [vmem:[#allocation9 + $0x28] sm:$0xf]
        %v2056 = vld [vmem:[#allocation9 + $0x2c] sm:$0xf]
        %v2057 = vld [vmem:[#allocation9 + $0x30] sm:$0xf]
        %v2058 = vld [vmem:[#allocation9 + $0x34] sm:$0xf]
        %v2059 = vld [vmem:[#allocation9 + $0x38] sm:$0xf]
        %v2060 = vld [vmem:[#allocation9 + $0x3c] sm:$0xf]
        %v2061 = vld [vmem:[%s6] sm:$0x1]
        %v2063 = vlaneseq
        %v2064 = vshrl.u32 %v2063, 7
        %v2065 = vsub.s32 0, %v2064
        %v2066 = vrot.slane %v2061, %v2065
        %v2084 = vunpack.c.l.b16 %v2045
        %v2085 = vunpack.c.l.b16 %v2046
        %v2086 = vunpack.c.l.b16 %v2047
        %v2087 = vunpack.c.l.b16 %v2048
        %v2088 = vunpack.c.l.b16 %v2049
        %v2089 = vunpack.c.l.b16 %v2050
        %v2090 = vunpack.c.l.b16 %v2051
        %v2091 = vunpack.c.l.b16 %v2052
        %v2092 = vunpack.c.l.b16 %v2053
        %v2093 = vunpack.c.l.b16 %v2054
        %v2094 = vunpack.c.l.b16 %v2055
        %v2095 = vunpack.c.l.b16 %v2056
        %v2096 = vunpack.c.l.b16 %v2057
        %v2097 = vunpack.c.l.b16 %v2058
        %v2098 = vunpack.c.l.b16 %v2059
        %v2099 = vunpack.c.l.b16 %v2060
        %v2100 = vpack.c.b16 %v2085, %v2084
        %v2101 = vpack.c.b16 %v2087, %v2086
        %v2102 = vpack.c.b16 %v2089, %v2088
        %v2103 = vpack.c.b16 %v2091, %v2090
        %v2104 = vpack.c.b16 %v2093, %v2092
        %v2105 = vpack.c.b16 %v2095, %v2094
        %v2106 = vpack.c.b16 %v2097, %v2096
        %v2107 = vpack.c.b16 %v2099, %v2098
        %2116 = vmatprep.subr.bf16.mxu0 0
        %2117 = vmatpush1.bf16.msra.mxu0 %v2107
        %2118 = vmatprep.subr.bf16.mxu0 0
        %2119 = vmatpush1.bf16.msra.mxu0 %v2106
        %2120 = vmatprep.subr.bf16.mxu0 0
        %2121 = vmatpush1.bf16.msra.mxu0 %v2105
        %2122 = vmatprep.subr.bf16.mxu0 0
        %2123 = vmatpush1.bf16.msra.mxu0 %v2104
        %2124 = vmatprep.subr.bf16.mxu0 0
        %2125 = vmatpush1.bf16.msra.mxu0 %v2103
        %2126 = vmatprep.subr.bf16.mxu0 0
        %2127 = vmatpush1.bf16.msra.mxu0 %v2102
        %2128 = vmatprep.subr.bf16.mxu0 0
        %2129 = vmatpush1.bf16.msra.mxu0 %v2101
        %2130 = vmatprep.subr.bf16.mxu0 0
        %2131 = vmatpush1.bf16.msra.mxu0 %v2100
        %2132 = vmatprep.subr.bf16.mxu0 0
        %2133 = vmatpush2.bf16.msra.mxu0 0
        %2134 = vmatprep.subr.bf16.mxu0 0
        %2135 = vmatpush2.bf16.msra.mxu0 0
        %2136 = vmatprep.subr.bf16.mxu0 0
        %2137 = vmatpush2.bf16.msra.mxu0 0
        %2138 = vmatprep.subr.bf16.mxu0 0
        %2139 = vmatpush2.bf16.msra.mxu0 0
        %2140 = vmatprep.subr.bf16.mxu0 0
        %2141 = vmatpush2.bf16.msra.mxu0 0
        %2142 = vmatprep.subr.bf16.mxu0 0
        %2143 = vmatpush2.bf16.msra.mxu0 0
        %2144 = vmatprep.subr.bf16.mxu0 0
        %2145 = vmatpush2.bf16.msra.mxu0 0
        %2146 = vmatprep.subr.bf16.mxu0 0
        %2147 = vmatpush2.bf16.msra.mxu0 0
        %2148 = vmatprep.mubr.bf16.mxu0 0
        %2149 = vmatmul.mubr.bf16.gmra.mxu0 %v2041
        %v2150 = vpop.f32.mrf.mxu0
        %v2151 = vadd.f32 %v2066, %v2150
        %v2152 = vpop.f32.mrf.mxu0
        %v2153 = vpop.f32.mrf.mxu0
        %v2154 = vadd.f32 %v2066, %v2153
        %v2155 = vpop.f32.mrf.mxu0
        %2156 = vmatprep.mubr.bf16.mxu0 0
        %2157 = vmatmul.mubr.bf16.gmra.mxu0 %v2042
        %v2158 = vpop.f32.mrf.mxu0
        %v2159 = vadd.f32 %v2066, %v2158
        %v2160 = vpop.f32.mrf.mxu0
        %v2161 = vpop.f32.mrf.mxu0
        %v2162 = vadd.f32 %v2066, %v2161
        %v2163 = vpop.f32.mrf.mxu0
        %2164 = vmatprep.mubr.bf16.mxu0 0
        %2165 = vmatmul.mubr.bf16.gmra.mxu0 %v2043
        %v2166 = vpop.f32.mrf.mxu0
        %v2167 = vadd.f32 %v2066, %v2166
        %v2168 = vpop.f32.mrf.mxu0
        %v2169 = vpop.f32.mrf.mxu0
        %v2170 = vadd.f32 %v2066, %v2169
        %v2171 = vpop.f32.mrf.mxu0
        %2172 = vmatprep.mubr.bf16.mxu0 0
        %2173 = vmatmul.mubr.bf16.gmra.mxu0 %v2044
        %v2174 = vpop.f32.mrf.mxu0
        %v2175 = vadd.f32 %v2066, %v2174
        %v2176 = vpop.f32.mrf.mxu0
        %v2177 = vpop.f32.mrf.mxu0
        %v2178 = vadd.f32 %v2066, %v2177
        %v2179 = vpop.f32.mrf.mxu0
        %2180 = vdwg.mxu0
        %v2181 = vadd.f32 %v2151, %v2154
        %v2182 = vadd.f32 %v2181, %v2159
        %v2183 = vadd.f32 %v2182, %v2162
        %v2184 = vadd.f32 %v2183, %v2167
        %v2185 = vadd.f32 %v2184, %v2170
        %v2186 = vadd.f32 %v2185, %v2175
        %v2187 = vadd.f32 %v2186, %v2178
        %v2188 = vrot.slane %v2187, 4
        %v2189 = vadd.f32 %v2187, %v2188
        %v2190 = vrot.slane %v2189, 2
        %v2191 = vadd.f32 %v2189, %v2190
        %v2192 = vrot.slane %v2191, 1
        %v2193 = vadd.f32 %v2191, %v2192
        %v2194 = vrcp.pop 64.0
        %v2195 = vmul.f32 %v2193, %v2194
        %v2196 = vpack.c.bf16 %v2195, %v2195
        %v2197 = vld [vmem:[#allocation11] sm:$0xf]
        %v2198 = vld [vmem:[#allocation11 + $0x4] sm:$0xf]
        %v2199 = vld [vmem:[#allocation11 + $0x8] sm:$0xf]
        %v2200 = vld [vmem:[#allocation11 + $0xc] sm:$0xf]
        %v2201 = vld [vmem:[#allocation11 + $0x10] sm:$0xf]
        %v2202 = vld [vmem:[#allocation11 + $0x14] sm:$0xf]
        %v2203 = vld [vmem:[#allocation11 + $0x18] sm:$0xf]
        %v2204 = vld [vmem:[#allocation11 + $0x1c] sm:$0xf]
        %v2205 = vld [vmem:[#allocation11 + $0x20] sm:$0xf]
        %v2206 = vld [vmem:[#allocation11 + $0x24] sm:$0xf]
        %v2207 = vld [vmem:[#allocation11 + $0x28] sm:$0xf]
        %v2208 = vld [vmem:[#allocation11 + $0x2c] sm:$0xf]
        %v2209 = vld [vmem:[#allocation11 + $0x30] sm:$0xf]
        %v2210 = vld [vmem:[#allocation11 + $0x34] sm:$0xf]
        %v2211 = vld [vmem:[#allocation11 + $0x38] sm:$0xf]
        %v2212 = vld [vmem:[#allocation11 + $0x3c] sm:$0xf]
        %v2229 = vunpack.c.l.b16 %v2197
        %v2230 = vunpack.c.l.b16 %v2198
        %v2231 = vunpack.c.l.b16 %v2199
        %v2232 = vunpack.c.l.b16 %v2200
        %v2233 = vunpack.c.l.b16 %v2201
        %v2234 = vunpack.c.l.b16 %v2202
        %v2235 = vunpack.c.l.b16 %v2203
        %v2236 = vunpack.c.l.b16 %v2204
        %v2237 = vunpack.c.l.b16 %v2205
        %v2238 = vunpack.c.l.b16 %v2206
        %v2239 = vunpack.c.l.b16 %v2207
        %v2240 = vunpack.c.l.b16 %v2208
        %v2241 = vunpack.c.l.b16 %v2209
        %v2242 = vunpack.c.l.b16 %v2210
        %v2243 = vunpack.c.l.b16 %v2211
        %v2244 = vunpack.c.l.b16 %v2212
        %v2245 = vpack.c.b16 %v2230, %v2229
        %v2246 = vpack.c.b16 %v2232, %v2231
        %v2247 = vpack.c.b16 %v2234, %v2233
        %v2248 = vpack.c.b16 %v2236, %v2235
        %v2249 = vpack.c.b16 %v2238, %v2237
        %v2250 = vpack.c.b16 %v2240, %v2239
        %v2251 = vpack.c.b16 %v2242, %v2241
        %v2252 = vpack.c.b16 %v2244, %v2243
        %2261 = vmatprep.subr.bf16.mxu0 0
        %2262 = vmatpush1.bf16.msra.mxu0 %v2252
        %2263 = vmatprep.subr.bf16.mxu0 0
        %2264 = vmatpush1.bf16.msra.mxu0 %v2251
        %2265 = vmatprep.subr.bf16.mxu0 0
        %2266 = vmatpush1.bf16.msra.mxu0 %v2250
        %2267 = vmatprep.subr.bf16.mxu0 0
        %2268 = vmatpush1.bf16.msra.mxu0 %v2249
        %2269 = vmatprep.subr.bf16.mxu0 0
        %2270 = vmatpush1.bf16.msra.mxu0 %v2248
        %2271 = vmatprep.subr.bf16.mxu0 0
        %2272 = vmatpush1.bf16.msra.mxu0 %v2247
        %2273 = vmatprep.subr.bf16.mxu0 0
        %2274 = vmatpush1.bf16.msra.mxu0 %v2246
        %2275 = vmatprep.subr.bf16.mxu0 0
        %2276 = vmatpush1.bf16.msra.mxu0 %v2245
        %2277 = vmatprep.subr.bf16.mxu0 0
        %2278 = vmatpush2.bf16.msra.mxu0 0
        %2279 = vmatprep.subr.bf16.mxu0 0
        %2280 = vmatpush2.bf16.msra.mxu0 0
        %2281 = vmatprep.subr.bf16.mxu0 0
        %2282 = vmatpush2.bf16.msra.mxu0 0
        %2283 = vmatprep.subr.bf16.mxu0 0
        %2284 = vmatpush2.bf16.msra.mxu0 0
        %2285 = vmatprep.subr.bf16.mxu0 0
        %2286 = vmatpush2.bf16.msra.mxu0 0
        %2287 = vmatprep.subr.bf16.mxu0 0
        %2288 = vmatpush2.bf16.msra.mxu0 0
        %2289 = vmatprep.subr.bf16.mxu0 0
        %2290 = vmatpush2.bf16.msra.mxu0 0
        %2291 = vmatprep.subr.bf16.mxu0 0
        %2292 = vmatpush2.bf16.msra.mxu0 0
        %2293 = vmatprep.mubr.bf16.mxu0 0
        %2294 = vmatmul.mubr.bf16.gmra.mxu0 %v2196
        %v2295 = vpop.f32.mrf.mxu0
        %v2296 = vadd.f32 0.0, %v2295
        %v2297 = vpop.f32.mrf.mxu0
        %v2298 = vpop.f32.mrf.mxu0
        %v2299 = vpop.f32.mrf.mxu0
        %2300 = vdwg.mxu0
        %v2301 = vmax.f32 %v2296, 0.0
        %v2302 = vpack.c.bf16 %v2301, %v2301
        %v2303 = vld [vmem:[#allocation12] sm:$0xf]
        %v2304 = vld [vmem:[#allocation12 + $0x4] sm:$0xf]
        %v2305 = vld [vmem:[#allocation12 + $0x8] sm:$0xf]
        %v2306 = vld [vmem:[#allocation12 + $0xc] sm:$0xf]
        %v2307 = vld [vmem:[#allocation12 + $0x10] sm:$0xf]
        %v2308 = vld [vmem:[#allocation12 + $0x14] sm:$0xf]
        %v2309 = vld [vmem:[#allocation12 + $0x18] sm:$0xf]
        %v2310 = vld [vmem:[#allocation12 + $0x1c] sm:$0xf]
        %v2311 = vld [vmem:[#allocation12 + $0x20] sm:$0xf]
        %v2312 = vld [vmem:[#allocation12 + $0x24] sm:$0xf]
        %v2313 = vld [vmem:[#allocation12 + $0x28] sm:$0xf]
        %v2314 = vld [vmem:[#allocation12 + $0x2c] sm:$0xf]
        %v2315 = vld [vmem:[#allocation12 + $0x30] sm:$0xf]
        %v2316 = vld [vmem:[#allocation12 + $0x34] sm:$0xf]
        %v2317 = vld [vmem:[#allocation12 + $0x38] sm:$0xf]
        %v2318 = vld [vmem:[#allocation12 + $0x3c] sm:$0xf]
        %v2335 = vunpack.c.l.b16 %v2303
        %v2336 = vunpack.c.l.b16 %v2304
        %v2337 = vunpack.c.l.b16 %v2305
        %v2338 = vunpack.c.l.b16 %v2306
        %v2339 = vunpack.c.l.b16 %v2307
        %v2340 = vunpack.c.l.b16 %v2308
        %v2341 = vunpack.c.l.b16 %v2309
        %v2342 = vunpack.c.l.b16 %v2310
        %v2343 = vunpack.c.l.b16 %v2311
        %v2344 = vunpack.c.l.b16 %v2312
        %v2345 = vunpack.c.l.b16 %v2313
        %v2346 = vunpack.c.l.b16 %v2314
        %v2347 = vunpack.c.l.b16 %v2315
        %v2348 = vunpack.c.l.b16 %v2316
        %v2349 = vunpack.c.l.b16 %v2317
        %v2350 = vunpack.c.l.b16 %v2318
        %v2351 = vpack.c.b16 %v2336, %v2335
        %v2352 = vpack.c.b16 %v2338, %v2337
        %v2353 = vpack.c.b16 %v2340, %v2339
        %v2354 = vpack.c.b16 %v2342, %v2341
        %v2355 = vpack.c.b16 %v2344, %v2343
        %v2356 = vpack.c.b16 %v2346, %v2345
        %v2357 = vpack.c.b16 %v2348, %v2347
        %v2358 = vpack.c.b16 %v2350, %v2349
        %2367 = vmatprep.subr.bf16.mxu0 0
        %2368 = vmatpush1.bf16.msra.mxu0 %v2358
        %2369 = vmatprep.subr.bf16.mxu0 0
        %2370 = vmatpush1.bf16.msra.mxu0 %v2357
        %2371 = vmatprep.subr.bf16.mxu0 0
        %2372 = vmatpush1.bf16.msra.mxu0 %v2356
        %2373 = vmatprep.subr.bf16.mxu0 0
        %2374 = vmatpush1.bf16.msra.mxu0 %v2355
        %2375 = vmatprep.subr.bf16.mxu0 0
        %2376 = vmatpush1.bf16.msra.mxu0 %v2354
        %2377 = vmatprep.subr.bf16.mxu0 0
        %2378 = vmatpush1.bf16.msra.mxu0 %v2353
        %2379 = vmatprep.subr.bf16.mxu0 0
        %2380 = vmatpush1.bf16.msra.mxu0 %v2352
        %2381 = vmatprep.subr.bf16.mxu0 0
        %2382 = vmatpush1.bf16.msra.mxu0 %v2351
        %2383 = vmatprep.subr.bf16.mxu0 0
        %2384 = vmatpush2.bf16.msra.mxu0 0
        %2385 = vmatprep.subr.bf16.mxu0 0
        %2386 = vmatpush2.bf16.msra.mxu0 0
        %2387 = vmatprep.subr.bf16.mxu0 0
        %2388 = vmatpush2.bf16.msra.mxu0 0
        %2389 = vmatprep.subr.bf16.mxu0 0
        %2390 = vmatpush2.bf16.msra.mxu0 0
        %2391 = vmatprep.subr.bf16.mxu0 0
        %2392 = vmatpush2.bf16.msra.mxu0 0
        %2393 = vmatprep.subr.bf16.mxu0 0
        %2394 = vmatpush2.bf16.msra.mxu0 0
        %2395 = vmatprep.subr.bf16.mxu0 0
        %2396 = vmatpush2.bf16.msra.mxu0 0
        %2397 = vmatprep.subr.bf16.mxu0 0
        %2398 = vmatpush2.bf16.msra.mxu0 0
        %2399 = vmatprep.mubr.bf16.mxu0 0
        %2400 = vmatmul.mubr.bf16.gmra.mxu0 %v2302
        %v2401 = vpop.f32.mrf.mxu0
        %v2402 = vadd.f32 0.0, %v2401
        %v2403 = vpop.f32.mrf.mxu0
        %v2404 = vpop.f32.mrf.mxu0
        %v2405 = vpop.f32.mrf.mxu0
        %2406 = vdwg.mxu0
        %v2407 = vxor.u32 %v2402, 2147483648
        %v2408 = vmul.f32 %v2407, 1.442695
        %v2409 = vpow.pop %v2408
        %v2410 = vadd.f32 %v2409, 1.0
        %v2411 = vrcp.pop %v2410
        %v2412 = vmul.f32 1.0, %v2411
        %v2413 = vlaneseq
        %v2414 = vshrl.u32 %v2413, 7
        %v2415 = vsub.s32 0, %v2414
        %v2416 = vrot.slane %v2412, %v2415
        %v2417 = vmul.f32 %v2151, %v2416
        %v2418 = vmul.f32 %v2154, %v2416
        %v2419 = vmul.f32 %v2159, %v2416
        %v2420 = vmul.f32 %v2162, %v2416
        %v2421 = vmul.f32 %v2167, %v2416
        %v2422 = vmul.f32 %v2170, %v2416
        %v2423 = vmul.f32 %v2175, %v2416
        %v2424 = vmul.f32 %v2178, %v2416
        %v2425 = vadd.f32 %v2417, %v425
        %v2426 = vadd.f32 %v2418, %v426
        %v2427 = vadd.f32 %v2419, %v427
        %v2428 = vadd.f32 %v2420, %v428
        %v2429 = vadd.f32 %v2421, %v429
        %v2430 = vadd.f32 %v2422, %v430
        %v2431 = vadd.f32 %v2423, %v431
        %v2432 = vadd.f32 %v2424, %v432
        %2433 = vst [vmem:[%s423] sm:$0xff] %v2425
        %2434 = vst [vmem:[%s423 + $0x8] sm:$0xff] %v2426
        %2435 = vst [vmem:[%s423 + $0x10] sm:$0xff] %v2427
        %2436 = vst [vmem:[%s423 + $0x18] sm:$0xff] %v2428
        %2437 = vst [vmem:[%s423 + $0x20] sm:$0xff] %v2429
        %2438 = vst [vmem:[%s423 + $0x28] sm:$0xff] %v2430
        %2439 = vst [vmem:[%s423 + $0x30] sm:$0xff] %v2431
        %2440 = vst [vmem:[%s423 + $0x38] sm:$0xff] %v2432
        %s2441 = sand.u32 %s231, 1
        %s2442 = scalar_lea.sflag [#allocation5], %s2441
        %s2443 = sand.u32 %s231, 1
        %s2444 = smul.addr %s2443, 64
        %s2445 = scalar_lea.vmem [#allocation14], %s2444
        // Predicated region
        $region81: #{tpu_custom_call.1} parent=55 // pred_check
          %p2446 = pneg %p241
        $region82: #{tpu_custom_call.1} parent=55 // pred_check_branch
          %2448 = sbr.rel (%p2446) target = $region84
        $region83: #{tpu_custom_call.1} parent=55 // pred_region
          %s2450 = ssub.s32 1024, 1024
          %2451 = vsyncadd %s2442, %s2450
          %s2452 = smul.addr %s29, 8
          %s2453 = smul.addr %s2452, 128
          %s2454 = scalar_lea.hbm %s9, %s2453
          %s2455 = sshll.u32 %s2445, 4
          %s2456 = int_to_ptr.vmem [resolvable:$true] %s2455
          %2461 = dma.vmem_to_hbm [thread:$0]  %s2456, 1024, %s2454, %s2442, 128, 128, 8
        $region84: #{tpu_custom_call.1} parent=55 // pred_fallthru
          _
      $region56: #{tpu_custom_call.1} parent=5 // pred_fallthru
        _
      %p2462 = scmp.le.s32.totalorder 2, %s24
      // Predicated region
      $region85: #{tpu_custom_call.1} parent=5 // pred_check
        %p2463 = pneg %p2462
      $region86: #{tpu_custom_call.1} parent=5 // pred_check_branch
        %2465 = sbr.rel (%p2463) target = $region88
      $region87: #{tpu_custom_call.1} parent=5 // pred_region
        %s2466 = ssub.s32 %s24, 2
        // Predicated region
        $region89: #{tpu_custom_call.1} parent=87 // pred_check
          %p2467 = pneg %p247
        $region90: #{tpu_custom_call.1} parent=87 // pred_check_branch
          %2469 = sbr.rel (%p2467) target = $region92
        $region91: #{tpu_custom_call.1} parent=87 // pred_region
          %s2470 = sand.u32 %s232, 1
          %s2471 = scalar_lea.sflag [#allocation5], %s2470
          %s2472 = sand.u32 %s232, 1
          %s2473 = smul.addr %s2472, 64
          %s2474 = scalar_lea.vmem [#allocation14], %s2473
          %2475 = dma.done %s2471, 1024
        $region92: #{tpu_custom_call.1} parent=87 // pred_fallthru
          _
      $region88: #{tpu_custom_call.1} parent=5 // pred_fallthru
        _
    $region6: #{tpu_custom_call.1} parent=1 // loop_footer
      %s28 = sadd.s32 1, %s24
    $region7: #{tpu_custom_call.1} parent=1 // loop_footer_branch
      %23 = sbr.rel target = $region3
    $region8: #{tpu_custom_call.1} parent=1 // loop_exit
      _
    %2476 = vsyncpa [#allocation4], 1
    %s2477 = scalar_lea.sflag [#allocation4], 1
    %2478 = vsyncpa %s2477, 1
    %2479 = vsyncpa [#allocation7], 1
    %2480 = vsyncpa [#allocation10], 1
    %2481 = vsyncpa [#allocation13], 1
    %2482 = vsyncpa [#allocation5], 1
    %s2483 = scalar_lea.sflag [#allocation5], 1
    %2484 = vsyncpa %s2483, 1

</llo_original>
